<compile_context>
chip_gen: v7x
topology: tpu7x:2x2x1
jax: 0.10.0
libtpu: 0.0.40
codegen_flags: <defaults>
</compile_context>

<pallas_src>
import jax
import jax.numpy as jnp
from jax.experimental import pallas as pl
from jax.experimental.pallas import tpu as pltpu  # noqa: F401 (TPU backend module)


# ------------------------------- kernel -------------------------------------

def _vae_decoder_kernel(z_ref, mask_ref,
                        w12_ref, b12_ref,
                        g1w_ref, g1b_ref, g2w_ref, g2b_ref,
                        wout_ref, bout_ref,
                        out_ref):
    B = z_ref.shape[0]
    BL = mask_ref.shape[0]
    L = BL // B
    HP = w12_ref.shape[1] // L          # padded per-position slot width (=128)

    # Fused fc_vae1+fc_vae2: bf16 operands, f32 accumulate.  Output lanes are
    # grouped in L slots of HP lanes, one slot per sequence position.
    hz = jnp.dot(z_ref[...].astype(jnp.bfloat16), w12_ref[...],
                 preferred_element_type=jnp.float32) + b12_ref[...]   # (B, L*HP)

    # hz.view(B, L, H) -> x rows ordered (b*L + l).  Every slice starts at a
    # multiple of 128 lanes (cheap vreg selects, no cross-lane rotates).
    x = jnp.concatenate(
        [hz[b:b + 1, l * HP:(l + 1) * HP] for b in range(B) for l in range(L)],
        axis=0)                                                        # (BL, HP)

    mask_col = mask_ref[...]                                           # (BL, 1)

    # Row masks marking the first / last position of each length-L segment, so
    # the conv shifts never leak across batch elements.
    rows = jax.lax.broadcasted_iota(jnp.int32, (BL, HP), 0)
    seg_first = rows == 0
    seg_last = rows == (L - 1)
    for b in range(1, B):
        seg_first = jnp.logical_or(seg_first, rows == b * L)
        seg_last = jnp.logical_or(seg_last, rows == (b + 1) * L - 1)

    zero_row = jnp.zeros((1, HP), jnp.float32)

    def gated_block(x, wg_ref, bg_ref):
        # Conv1d(k=3, pad=1) for conv1 + conv2 fused into a single
        # (BL, 3*HP) @ (3*HP, 2*HP) MXU matmul.
        x_prev = jnp.where(seg_first, 0.0,
                           jnp.concatenate([zero_row, x[:-1, :]], axis=0))
        x_next = jnp.where(seg_last, 0.0,
                           jnp.concatenate([x[1:, :], zero_row], axis=0))
        xk = jnp.concatenate([x_prev, x, x_next], axis=1).astype(jnp.bfloat16)
        y = jnp.dot(xk, wg_ref[...], preferred_element_type=jnp.float32) + bg_ref[...]
        src1 = y[:, :HP]                       # conv1 output (aligned slot)
        src2 = jax.nn.sigmoid(y[:, HP:])       # conv2 -> sigmoid; dropout = identity (eval)
        # (x*(1-s2) + s1*s2) * mask  ==  (x + s2*(s1 - x)) * mask
        return (x + src2 * (src1 - x)) * mask_col

    x = gated_block(x, g1w_ref, g1b_ref)
    x = gated_block(x, g2w_ref, g2b_ref)

    # fc_out: lane-dense 128-wide output store (padding sliced off outside).
    logits = jnp.dot(x.astype(jnp.bfloat16), wout_ref[...],
                     preferred_element_type=jnp.float32) + bout_ref[...]
    out_ref[...] = logits.astype(out_ref.dtype)


# ------------------------------- wrapper -------------------------------------

def vae_decoder_forward(z, mask, packed, vocab):
    """z: (B, H) f32, mask: (B, L) f32, packed: output of prepare_params."""
    B, H = z.shape
    L = mask.shape[1]
    BL = B * L
    HP = packed["wout"].shape[0]
    Vp = packed["wout"].shape[1]

    mask_flat = mask.reshape(BL, 1)            # row (b*L + l) = mask[b, l]

    args = (z, mask_flat,
            packed["w12"], packed["b12"],
            packed["g1w"], packed["g1b"],
            packed["g2w"], packed["g2b"],
            packed["wout"], packed["bout"])

    flops = (2 * B * H * L * HP
             + 2 * (2 * BL * 3 * HP * 2 * HP)
             + 2 * BL * HP * Vp)
    bytes_accessed = int(sum(int(a.size) * a.dtype.itemsize for a in args)
                         + BL * Vp * 4)
    cost = pl.CostEstimate(flops=flops, transcendentals=2 * BL * HP,
                           bytes_accessed=bytes_accessed)

    out = pl.pallas_call(
        _vae_decoder_kernel,
        out_shape=jax.ShapeDtypeStruct((BL, Vp), jnp.float32),
        cost_estimate=cost,
    )(*args)

    # Free row-major reshape + one small slice to drop the lane padding.
    return out.reshape(B, L, Vp)[:, :, :vocab]


# --------------------- one-time weight fusion / packing -----------------------

def prepare_params(p, H, L, V):
    """Fold fc_vae1 into fc_vae2, fuse conv taps, pad to 128-lane slots, cast
    matmul weights to bf16.  Run ONCE (hoisted out of the forward path)."""
    HP = ((H + 127) // 128) * 128
    Vp = ((V + 127) // 128) * 128
    f32, bf16 = jnp.float32, jnp.bfloat16

    # PyTorch nn.Linear stores weight as (out, in) and computes x @ W.T.
    w1 = p["fc_vae1_w"].T                              # (H, H)  in x out
    w2 = p["fc_vae2_w"].T                              # (H, L*H)
    w12 = w1 @ w2                                      # exact fold: no activation between
    b12 = p["fc_vae1_b"] @ w2 + p["fc_vae2_b"]         # (L*H,)

    # Lane-align: position l -> lanes [l*HP, l*HP + H), rest zero.
    w12p = jnp.pad(w12.reshape(H, L, H), ((0, 0), (0, 0), (0, HP - H))).reshape(H, L * HP)
    b12p = jnp.pad(b12.reshape(L, H), ((0, 0), (0, HP - H))).reshape(1, L * HP)

    def fuse_gate(c1w, c1b, c2w, c2b):
        # PyTorch Conv1d weight layout is (out, in, k); tap k=0/1/2 multiplies
        # x_prev / x / x_next.  Build (3*HP, 2*HP): row block t = tap t (in->out),
        # column block 0 = conv1 (src1), column block 1 = conv2 (src2).
        wg = jnp.zeros((3 * HP, 2 * HP), f32)
        bg = jnp.zeros((1, 2 * HP), f32)
        for t in range(3):
            wg = wg.at[t * HP:t * HP + H, 0:H].set(c1w[:, :, t].T)
            wg = wg.at[t * HP:t * HP + H, HP:HP + H].set(c2w[:, :, t].T)
        bg = bg.at[0, 0:H].set(c1b).at[0, HP:HP + H].set(c2b)
        return wg.astype(bf16), bg

    g1w, g1b = fuse_gate(p["g1_c1w"], p["g1_c1b"], p["g1_c2w"], p["g1_c2b"])
    g2w, g2b = fuse_gate(p["g2_c1w"], p["g2_c1b"], p["g2_c2w"], p["g2_c2b"])

    wout = jnp.zeros((HP, Vp), f32).at[:H, :V].set(p["fc_out_w"].T)
    bout = jnp.zeros((1, Vp), f32).at[0, :V].set(p["fc_out_b"])

    return dict(w12=w12p.astype(bf16), b12=b12p,
                g1w=g1w, g1b=g1b, g2w=g2w, g2b=g2b,
                wout=wout.astype(bf16), bout=bout)


# --------------------------- deterministic init --------------------------------
# Parameters are generated directly in PyTorch's native layouts:
#   Linear.weight: (out, in), Conv1d.weight: (out, in, k), biases 1-D.

def init_params(key, H, L, V):
    ks = jax.random.split(key, 16)

    def rnd(k, shape, scale):
        return jax.random.normal(k, shape, jnp.float32) * scale

    p = {}
    p["fc_vae1_w"] = rnd(ks[0], (H, H), 1.0 / H ** 0.5)
    p["fc_vae1_b"] = rnd(ks[1], (H,), 0.02)
    p["fc_vae2_w"] = rnd(ks[2], (L * H, H), 1.0 / H ** 0.5)
    p["fc_vae2_b"] = rnd(ks[3], (L * H,), 0.02)
    for i, blk in enumerate(("g1", "g2")):
        p[blk + "_c1w"] = rnd(ks[4 + 4 * i], (H, H, 3), 1.0 / (3 * H) ** 0.5)
        p[blk + "_c1b"] = rnd(ks[5 + 4 * i], (H,), 0.02)
        p[blk + "_c2w"] = rnd(ks[6 + 4 * i], (H, H, 3), 1.0 / (3 * H) ** 0.5)
        p[blk + "_c2b"] = rnd(ks[7 + 4 * i], (H,), 0.02)
    p["fc_out_w"] = rnd(ks[12], (V, H), 1.0 / H ** 0.5)
    p["fc_out_b"] = rnd(ks[13], (V,), 0.02)
    return p


# ------------------------------ plain-JAX reference ----------------------------

def reference_forward(z, mask, p):
    B, H = z.shape
    L = mask.shape[1]
    h = z @ p["fc_vae1_w"].T + p["fc_vae1_b"]
    x = (h @ p["fc_vae2_w"].T + p["fc_vae2_b"]).reshape(B, L, H)   # hz.view(-1, L, H)
    mask_e = mask[:, :, None]
    for blk in ("g1", "g2"):
        c1w, c1b = p[blk + "_c1w"], p[blk + "_c1b"]
        c2w, c2b = p[blk + "_c2w"], p[blk + "_c2b"]
        zero = jnp.zeros((B, 1, H), x.dtype)
        x_prev = jnp.concatenate([zero, x[:, :-1]], axis=1)
        x_next = jnp.concatenate([x[:, 1:], zero], axis=1)

        def conv(w, b):
            return (jnp.einsum("bli,oi->blo", x_prev, w[:, :, 0])
                    + jnp.einsum("bli,oi->blo", x, w[:, :, 1])
                    + jnp.einsum("bli,oi->blo", x_next, w[:, :, 2]) + b)

        src1 = conv(c1w, c1b)
        src2 = jax.nn.sigmoid(conv(c2w, c2b))      # dropout = identity (eval)
        x = (x * (1.0 - src2) + src1 * src2) * mask_e
    return jnp.einsum("blh,vh->blv", x, p["fc_out_w"]) + p["fc_out_b"]


# --------------------------------- main ---------------------------------------

if __name__ == "__main__":
    class Config:
        hidden_dim = 32
        max_length = 8
        char_table_size = 30
        dropout_level = 0.1

    cfg = Config()
    H = cfg.hidden_dim
    L = 2 * cfg.max_length + 1          # 17
    V = cfg.char_table_size + 2         # 32
    B = 2

    key = jax.random.PRNGKey(0)
    kz, km, kp = jax.random.split(key, 3)
    z = jax.random.normal(kz, (B, H), jnp.float32)
    mask = (jax.random.uniform(km, (B, L)) > 0.2).astype(jnp.float32)
    params = init_params(kp, H, L, V)

    # One-time weight fusion/packing, hoisted out of the forward path.
    packed = prepare_params(params, H, L, V)
    packed = jax.tree_util.tree_map(jax.block_until_ready, packed)

    fwd = jax.jit(vae_decoder_forward, static_argnames=("vocab",))
    out = fwd(z, mask, packed, vocab=V)
    out = jax.block_until_ready(out)

    ref = reference_forward(z, mask, params)
    assert out.shape == (B, L, V)
    err = float(jnp.max(jnp.abs(out - ref)))
    # bf16 MXU operands with f32 accumulation vs. a pure-f32 reference.
    assert jnp.allclose(out, ref, rtol=5e-2, atol=5e-2), err
    print("KERNEL_OK")
</pallas_src>

<mosaic_0001>
module attributes {stable_mosaic.version = 11 : i64} {
  func.func @_vae_decoder_kernel(%arg0: memref<2x32xf32, #tpu.memory_space<vmem>>, %arg1: memref<34x1xf32, #tpu.memory_space<vmem>>, %arg2: memref<32x2176xbf16, #tpu.memory_space<vmem>>, %arg3: memref<1x2176xf32, #tpu.memory_space<vmem>>, %arg4: memref<384x256xbf16, #tpu.memory_space<vmem>>, %arg5: memref<1x256xf32, #tpu.memory_space<vmem>>, %arg6: memref<384x256xbf16, #tpu.memory_space<vmem>>, %arg7: memref<1x256xf32, #tpu.memory_space<vmem>>, %arg8: memref<128x128xbf16, #tpu.memory_space<vmem>>, %arg9: memref<1x128xf32, #tpu.memory_space<vmem>>, %arg10: memref<34x128xf32, #tpu.memory_space<vmem>>) attributes {dimension_semantics = [], scalar_prefetch = 0 : i64, scratch_operands = 0 : i64, tpu.core_type = #tpu.core_type<tc>} {
    %c0 = arith.constant 0 : index
    %c0_0 = arith.constant 0 : index
    %0 = vector.load %arg0[%c0, %c0_0] : memref<2x32xf32, #tpu.memory_space<vmem>>, vector<2x32xf32>
    %1 = arith.truncf %0 : vector<2x32xf32> to vector<2x32xbf16>
    %c0_1 = arith.constant 0 : index
    %c0_2 = arith.constant 0 : index
    %2 = vector.load %arg2[%c0_1, %c0_2] : memref<32x2176xbf16, #tpu.memory_space<vmem>>, vector<32x2176xbf16>
    %cst = arith.constant dense<0.000000e+00> : vector<2x2176xf32>
    %3 = tpu.matmul %1, %2, %cst {dimension_numbers = #tpu.dot_dimension_numbers<[1], [0], [0], [1], [0, 0, 1, 1], [], []>} : vector<2x32xbf16>, vector<32x2176xbf16>, vector<2x2176xf32> -> vector<2x2176xf32>
    %c0_3 = arith.constant 0 : index
    %c0_4 = arith.constant 0 : index
    %4 = vector.load %arg3[%c0_3, %c0_4] : memref<1x2176xf32, #tpu.memory_space<vmem>>, vector<1x2176xf32>
    %5 = vector.broadcast %4 : vector<1x2176xf32> to vector<2x2176xf32>
    %6 = arith.addf %3, %5 : vector<2x2176xf32>
    %7 = vector.extract_strided_slice %6 {offsets = [0, 0], sizes = [1, 128], strides = [1, 1]} : vector<2x2176xf32> to vector<1x128xf32>
    %8 = vector.extract_strided_slice %6 {offsets = [0, 128], sizes = [1, 128], strides = [1, 1]} : vector<2x2176xf32> to vector<1x128xf32>
    %9 = vector.extract_strided_slice %6 {offsets = [0, 256], sizes = [1, 128], strides = [1, 1]} : vector<2x2176xf32> to vector<1x128xf32>
    %10 = vector.extract_strided_slice %6 {offsets = [0, 384], sizes = [1, 128], strides = [1, 1]} : vector<2x2176xf32> to vector<1x128xf32>
    %11 = vector.extract_strided_slice %6 {offsets = [0, 512], sizes = [1, 128], strides = [1, 1]} : vector<2x2176xf32> to vector<1x128xf32>
    %12 = vector.extract_strided_slice %6 {offsets = [0, 640], sizes = [1, 128], strides = [1, 1]} : vector<2x2176xf32> to vector<1x128xf32>
    %13 = vector.extract_strided_slice %6 {offsets = [0, 768], sizes = [1, 128], strides = [1, 1]} : vector<2x2176xf32> to vector<1x128xf32>
    %14 = vector.extract_strided_slice %6 {offsets = [0, 896], sizes = [1, 128], strides = [1, 1]} : vector<2x2176xf32> to vector<1x128xf32>
    %15 = vector.extract_strided_slice %6 {offsets = [0, 1024], sizes = [1, 128], strides = [1, 1]} : vector<2x2176xf32> to vector<1x128xf32>
    %16 = vector.extract_strided_slice %6 {offsets = [0, 1152], sizes = [1, 128], strides = [1, 1]} : vector<2x2176xf32> to vector<1x128xf32>
    %17 = vector.extract_strided_slice %6 {offsets = [0, 1280], sizes = [1, 128], strides = [1, 1]} : vector<2x2176xf32> to vector<1x128xf32>
    %18 = vector.extract_strided_slice %6 {offsets = [0, 1408], sizes = [1, 128], strides = [1, 1]} : vector<2x2176xf32> to vector<1x128xf32>
    %19 = vector.extract_strided_slice %6 {offsets = [0, 1536], sizes = [1, 128], strides = [1, 1]} : vector<2x2176xf32> to vector<1x128xf32>
    %20 = vector.extract_strided_slice %6 {offsets = [0, 1664], sizes = [1, 128], strides = [1, 1]} : vector<2x2176xf32> to vector<1x128xf32>
    %21 = vector.extract_strided_slice %6 {offsets = [0, 1792], sizes = [1, 128], strides = [1, 1]} : vector<2x2176xf32> to vector<1x128xf32>
    %22 = vector.extract_strided_slice %6 {offsets = [0, 1920], sizes = [1, 128], strides = [1, 1]} : vector<2x2176xf32> to vector<1x128xf32>
    %23 = vector.extract_strided_slice %6 {offsets = [0, 2048], sizes = [1, 128], strides = [1, 1]} : vector<2x2176xf32> to vector<1x128xf32>
    %24 = vector.extract_strided_slice %6 {offsets = [1, 0], sizes = [1, 128], strides = [1, 1]} : vector<2x2176xf32> to vector<1x128xf32>
    %25 = vector.extract_strided_slice %6 {offsets = [1, 128], sizes = [1, 128], strides = [1, 1]} : vector<2x2176xf32> to vector<1x128xf32>
    %26 = vector.extract_strided_slice %6 {offsets = [1, 256], sizes = [1, 128], strides = [1, 1]} : vector<2x2176xf32> to vector<1x128xf32>
    %27 = vector.extract_strided_slice %6 {offsets = [1, 384], sizes = [1, 128], strides = [1, 1]} : vector<2x2176xf32> to vector<1x128xf32>
    %28 = vector.extract_strided_slice %6 {offsets = [1, 512], sizes = [1, 128], strides = [1, 1]} : vector<2x2176xf32> to vector<1x128xf32>
    %29 = vector.extract_strided_slice %6 {offsets = [1, 640], sizes = [1, 128], strides = [1, 1]} : vector<2x2176xf32> to vector<1x128xf32>
    %30 = vector.extract_strided_slice %6 {offsets = [1, 768], sizes = [1, 128], strides = [1, 1]} : vector<2x2176xf32> to vector<1x128xf32>
    %31 = vector.extract_strided_slice %6 {offsets = [1, 896], sizes = [1, 128], strides = [1, 1]} : vector<2x2176xf32> to vector<1x128xf32>
    %32 = vector.extract_strided_slice %6 {offsets = [1, 1024], sizes = [1, 128], strides = [1, 1]} : vector<2x2176xf32> to vector<1x128xf32>
    %33 = vector.extract_strided_slice %6 {offsets = [1, 1152], sizes = [1, 128], strides = [1, 1]} : vector<2x2176xf32> to vector<1x128xf32>
    %34 = vector.extract_strided_slice %6 {offsets = [1, 1280], sizes = [1, 128], strides = [1, 1]} : vector<2x2176xf32> to vector<1x128xf32>
    %35 = vector.extract_strided_slice %6 {offsets = [1, 1408], sizes = [1, 128], strides = [1, 1]} : vector<2x2176xf32> to vector<1x128xf32>
    %36 = vector.extract_strided_slice %6 {offsets = [1, 1536], sizes = [1, 128], strides = [1, 1]} : vector<2x2176xf32> to vector<1x128xf32>
    %37 = vector.extract_strided_slice %6 {offsets = [1, 1664], sizes = [1, 128], strides = [1, 1]} : vector<2x2176xf32> to vector<1x128xf32>
    %38 = vector.extract_strided_slice %6 {offsets = [1, 1792], sizes = [1, 128], strides = [1, 1]} : vector<2x2176xf32> to vector<1x128xf32>
    %39 = vector.extract_strided_slice %6 {offsets = [1, 1920], sizes = [1, 128], strides = [1, 1]} : vector<2x2176xf32> to vector<1x128xf32>
    %40 = vector.extract_strided_slice %6 {offsets = [1, 2048], sizes = [1, 128], strides = [1, 1]} : vector<2x2176xf32> to vector<1x128xf32>
    %41 = tpu.concatenate %7, %8, %9, %10, %11, %12, %13, %14, %15, %16, %17, %18, %19, %20, %21, %22 in 0 : vector<1x128xf32>, vector<1x128xf32>, vector<1x128xf32>, vector<1x128xf32>, vector<1x128xf32>, vector<1x128xf32>, vector<1x128xf32>, vector<1x128xf32>, vector<1x128xf32>, vector<1x128xf32>, vector<1x128xf32>, vector<1x128xf32>, vector<1x128xf32>, vector<1x128xf32>, vector<1x128xf32>, vector<1x128xf32> -> vector<16x128xf32>
    %42 = tpu.concatenate %23, %24, %25, %26, %27, %28, %29, %30, %31, %32, %33, %34, %35, %36, %37, %38 in 0 : vector<1x128xf32>, vector<1x128xf32>, vector<1x128xf32>, vector<1x128xf32>, vector<1x128xf32>, vector<1x128xf32>, vector<1x128xf32>, vector<1x128xf32>, vector<1x128xf32>, vector<1x128xf32>, vector<1x128xf32>, vector<1x128xf32>, vector<1x128xf32>, vector<1x128xf32>, vector<1x128xf32>, vector<1x128xf32> -> vector<16x128xf32>
    %43 = tpu.concatenate %39, %40 in 0 : vector<1x128xf32>, vector<1x128xf32> -> vector<2x128xf32>
    %44 = tpu.concatenate %41, %42, %43 in 0 : vector<16x128xf32>, vector<16x128xf32>, vector<2x128xf32> -> vector<34x128xf32>
    %c0_5 = arith.constant 0 : index
    %c0_6 = arith.constant 0 : index
    %45 = vector.load %arg1[%c0_5, %c0_6] : memref<34x1xf32, #tpu.memory_space<vmem>>, vector<34x1xf32>
    %46 = tpu.iota {dimensions = array<i32: 0>} : vector<34x128xi32>
    %c0_i32 = arith.constant 0 : i32
    %47 = vector.broadcast %c0_i32 : i32 to vector<34x128xi32>
    %48 = arith.cmpi eq, %46, %47 : vector<34x128xi32>
    %c16_i32 = arith.constant 16 : i32
    %49 = vector.broadcast %c16_i32 : i32 to vector<34x128xi32>
    %50 = arith.cmpi eq, %46, %49 : vector<34x128xi32>
    %c17_i32 = arith.constant 17 : i32
    %51 = vector.broadcast %c17_i32 : i32 to vector<34x128xi32>
    %52 = arith.cmpi eq, %46, %51 : vector<34x128xi32>
    %53 = arith.ori %48, %52 : vector<34x128xi1>
    %c33_i32 = arith.constant 33 : i32
    %54 = vector.broadcast %c33_i32 : i32 to vector<34x128xi32>
    %55 = arith.cmpi eq, %46, %54 : vector<34x128xi32>
    %56 = arith.ori %50, %55 : vector<34x128xi1>
    %cst_7 = arith.constant 0.000000e+00 : f32
    %57 = vector.broadcast %cst_7 : f32 to vector<1x128xf32>
    %58 = vector.extract_strided_slice %44 {offsets = [0, 0], sizes = [33, 128], strides = [1, 1]} : vector<34x128xf32> to vector<33x128xf32>
    %59 = tpu.concatenate %57, %58 in 0 : vector<1x128xf32>, vector<33x128xf32> -> vector<34x128xf32>
    %cst_8 = arith.constant 0.000000e+00 : f32
    %60 = vector.broadcast %cst_8 : f32 to vector<34x128xf32>
    %61 = arith.select %53, %60, %59 : vector<34x128xi1>, vector<34x128xf32>
    %62 = vector.extract_strided_slice %44 {offsets = [1, 0], sizes = [33, 128], strides = [1, 1]} : vector<34x128xf32> to vector<33x128xf32>
    %63 = tpu.concatenate %62, %57 in 0 : vector<33x128xf32>, vector<1x128xf32> -> vector<34x128xf32>
    %cst_9 = arith.constant 0.000000e+00 : f32
    %64 = vector.broadcast %cst_9 : f32 to vector<34x128xf32>
    %65 = arith.select %56, %64, %63 : vector<34x128xi1>, vector<34x128xf32>
    %66 = tpu.concatenate %61, %44, %65 in 1 : vector<34x128xf32>, vector<34x128xf32>, vector<34x128xf32> -> vector<34x384xf32>
    %67 = arith.truncf %66 : vector<34x384xf32> to vector<34x384xbf16>
    %c0_10 = arith.constant 0 : index
    %c0_11 = arith.constant 0 : index
    %68 = vector.load %arg4[%c0_10, %c0_11] : memref<384x256xbf16, #tpu.memory_space<vmem>>, vector<384x256xbf16>
    %cst_12 = arith.constant dense<0.000000e+00> : vector<34x256xf32>
    %69 = tpu.matmul %67, %68, %cst_12 {dimension_numbers = #tpu.dot_dimension_numbers<[1], [0], [0], [1], [0, 0, 1, 1], [], []>} : vector<34x384xbf16>, vector<384x256xbf16>, vector<34x256xf32> -> vector<34x256xf32>
    %c0_13 = arith.constant 0 : index
    %c0_14 = arith.constant 0 : index
    %70 = vector.load %arg5[%c0_13, %c0_14] : memref<1x256xf32, #tpu.memory_space<vmem>>, vector<1x256xf32>
    %71 = vector.broadcast %70 : vector<1x256xf32> to vector<34x256xf32>
    %72 = arith.addf %69, %71 : vector<34x256xf32>
    %73 = vector.extract_strided_slice %72 {offsets = [0, 0], sizes = [34, 128], strides = [1, 1]} : vector<34x256xf32> to vector<34x128xf32>
    %74 = vector.extract_strided_slice %72 {offsets = [0, 128], sizes = [34, 128], strides = [1, 1]} : vector<34x256xf32> to vector<34x128xf32>
    %75 = arith.negf %74 : vector<34x128xf32>
    %76 = math.exp %75 : vector<34x128xf32>
    %cst_15 = arith.constant 1.000000e+00 : f32
    %77 = vector.broadcast %cst_15 : f32 to vector<34x128xf32>
    %78 = arith.addf %77, %76 : vector<34x128xf32>
    %79 = arith.divf %77, %78 : vector<34x128xf32>
    %80 = arith.subf %73, %44 : vector<34x128xf32>
    %81 = arith.mulf %79, %80 : vector<34x128xf32>
    %82 = arith.addf %44, %81 : vector<34x128xf32>
    %83 = vector.broadcast %45 : vector<34x1xf32> to vector<34x128xf32>
    %84 = arith.mulf %82, %83 : vector<34x128xf32>
    %85 = vector.extract_strided_slice %84 {offsets = [0, 0], sizes = [33, 128], strides = [1, 1]} : vector<34x128xf32> to vector<33x128xf32>
    %86 = tpu.concatenate %57, %85 in 0 : vector<1x128xf32>, vector<33x128xf32> -> vector<34x128xf32>
    %cst_16 = arith.constant 0.000000e+00 : f32
    %87 = vector.broadcast %cst_16 : f32 to vector<34x128xf32>
    %88 = arith.select %53, %87, %86 : vector<34x128xi1>, vector<34x128xf32>
    %89 = vector.extract_strided_slice %84 {offsets = [1, 0], sizes = [33, 128], strides = [1, 1]} : vector<34x128xf32> to vector<33x128xf32>
    %90 = tpu.concatenate %89, %57 in 0 : vector<33x128xf32>, vector<1x128xf32> -> vector<34x128xf32>
    %cst_17 = arith.constant 0.000000e+00 : f32
    %91 = vector.broadcast %cst_17 : f32 to vector<34x128xf32>
    %92 = arith.select %56, %91, %90 : vector<34x128xi1>, vector<34x128xf32>
    %93 = tpu.concatenate %88, %84, %92 in 1 : vector<34x128xf32>, vector<34x128xf32>, vector<34x128xf32> -> vector<34x384xf32>
    %94 = arith.truncf %93 : vector<34x384xf32> to vector<34x384xbf16>
    %c0_18 = arith.constant 0 : index
    %c0_19 = arith.constant 0 : index
    %95 = vector.load %arg6[%c0_18, %c0_19] : memref<384x256xbf16, #tpu.memory_space<vmem>>, vector<384x256xbf16>
    %cst_20 = arith.constant dense<0.000000e+00> : vector<34x256xf32>
    %96 = tpu.matmul %94, %95, %cst_20 {dimension_numbers = #tpu.dot_dimension_numbers<[1], [0], [0], [1], [0, 0, 1, 1], [], []>} : vector<34x384xbf16>, vector<384x256xbf16>, vector<34x256xf32> -> vector<34x256xf32>
    %c0_21 = arith.constant 0 : index
    %c0_22 = arith.constant 0 : index
    %97 = vector.load %arg7[%c0_21, %c0_22] : memref<1x256xf32, #tpu.memory_space<vmem>>, vector<1x256xf32>
    %98 = vector.broadcast %97 : vector<1x256xf32> to vector<34x256xf32>
    %99 = arith.addf %96, %98 : vector<34x256xf32>
    %100 = vector.extract_strided_slice %99 {offsets = [0, 0], sizes = [34, 128], strides = [1, 1]} : vector<34x256xf32> to vector<34x128xf32>
    %101 = vector.extract_strided_slice %99 {offsets = [0, 128], sizes = [34, 128], strides = [1, 1]} : vector<34x256xf32> to vector<34x128xf32>
    %102 = arith.negf %101 : vector<34x128xf32>
    %103 = math.exp %102 : vector<34x128xf32>
    %cst_23 = arith.constant 1.000000e+00 : f32
    %104 = vector.broadcast %cst_23 : f32 to vector<34x128xf32>
    %105 = arith.addf %104, %103 : vector<34x128xf32>
    %106 = arith.divf %104, %105 : vector<34x128xf32>
    %107 = arith.subf %100, %84 : vector<34x128xf32>
    %108 = arith.mulf %106, %107 : vector<34x128xf32>
    %109 = arith.addf %84, %108 : vector<34x128xf32>
    %110 = vector.broadcast %45 : vector<34x1xf32> to vector<34x128xf32>
    %111 = arith.mulf %109, %110 : vector<34x128xf32>
    %112 = arith.truncf %111 : vector<34x128xf32> to vector<34x128xbf16>
    %c0_24 = arith.constant 0 : index
    %c0_25 = arith.constant 0 : index
    %113 = vector.load %arg8[%c0_24, %c0_25] : memref<128x128xbf16, #tpu.memory_space<vmem>>, vector<128x128xbf16>
    %cst_26 = arith.constant dense<0.000000e+00> : vector<34x128xf32>
    %114 = tpu.matmul %112, %113, %cst_26 {dimension_numbers = #tpu.dot_dimension_numbers<[1], [0], [0], [1], [0, 0, 1, 1], [], []>} : vector<34x128xbf16>, vector<128x128xbf16>, vector<34x128xf32> -> vector<34x128xf32>
    %c0_27 = arith.constant 0 : index
    %c0_28 = arith.constant 0 : index
    %115 = vector.load %arg9[%c0_27, %c0_28] : memref<1x128xf32, #tpu.memory_space<vmem>>, vector<1x128xf32>
    %116 = vector.broadcast %115 : vector<1x128xf32> to vector<34x128xf32>
    %117 = arith.addf %114, %116 : vector<34x128xf32>
    %c0_29 = arith.constant 0 : index
    %c0_30 = arith.constant 0 : index
    %118 = vector.load %arg10[%c0_29, %c0_30] : memref<34x128xf32, #tpu.memory_space<vmem>>, vector<34x128xf32>
    tpu.vector_store %arg10[%c0_29, %c0_30], %117 {strides = array<i32>} : memref<34x128xf32, #tpu.memory_space<vmem>>, vector<34x128xf32>,
    return
  }
}

</mosaic_0001>

<llo_original>
// kernel: vae_decoder_forward.1
$region0: #{vae_decoder_forward.1}
  #allocation0 [shape = 'u32[]', space=smem, size = 0x4, offset = 0x4, fixed_abs, tag = 'smem constant byte address 0x4 - core index']
  #allocation1 [shape = 'u32[144,128]{1,0:T(1,128)}', space=vmem, size = 0x12000, scoped, tag = 'internal scratch']
  %s0 = inlined_call_operand.vmem [shape: f32[2,32], index: 0, kind: input, shape index: {}]
  %s1 = inlined_call_operand.vmem [shape: f32[34,1], index: 1, kind: input, shape index: {}]
  %s2 = inlined_call_operand.hbm [shape: bf16[32,2176], index: 2, kind: input, shape index: {}]
  %s3 = inlined_call_operand.hbm [shape: f32[1,2176], index: 3, kind: input, shape index: {}]
  %s4 = inlined_call_operand.hbm [shape: bf16[384,256], index: 4, kind: input, shape index: {}]
  %s5 = inlined_call_operand.vmem [shape: f32[1,256], index: 5, kind: input, shape index: {}]
  %s6 = inlined_call_operand.hbm [shape: bf16[384,256], index: 6, kind: input, shape index: {}]
  %s7 = inlined_call_operand.vmem [shape: f32[1,256], index: 7, kind: input, shape index: {}]
  %s8 = inlined_call_operand.vmem [shape: bf16[128,128], index: 8, kind: input, shape index: {}]
  %s9 = inlined_call_operand.vmem [shape: f32[1,128], index: 9, kind: input, shape index: {}]
  %s10 = inlined_call_operand.vmem [shape: f32[34,128], index: 10, kind: output, shape index: {}]
  %s11 = sld [smem:[#allocation0]]
  $region66: #{vae_decoder_forward.1} parent=0
    _
  %s13 = ssub.s32 1, %s11
  %s14 = scalar_select 0, %s13, %s11
  $region1: #{vae_decoder_forward.1} parent=0
    #allocation2 [shape = 'u8[139264]{0}', space=vmem, size = 0x22000, scoped, tag = 'input window, operand 2, single buffered']
    #allocation3 [shape = 's32[1]{0}', space=sflag, size = 0x4, scoped, tag = 'scoped memory for vae_decoder_forward.1']
    #allocation4 [shape = 'u8[8704]{0}', space=vmem, size = 0x2400, scoped, tag = 'input window, operand 3, single buffered']
    #allocation5 [shape = 's32[1]{0}', space=sflag, size = 0x4, scoped, tag = 'scoped memory for vae_decoder_forward.1']
    #allocation6 [shape = 'u8[196608]{0}', space=vmem, size = 0x30000, scoped, tag = 'input window, operand 4, single buffered']
    #allocation7 [shape = 'u8[196608]{0}', space=vmem, size = 0x30000, scoped, tag = 'input window, operand 6, single buffered']
    #allocation8 [shape = 's32[1]{0}', space=sflag, size = 0x4, scoped, tag = 'scoped memory for vae_decoder_forward.1']
    %15 = vsyncpa [#allocation3], 0
    %16 = vsyncpa [#allocation5], 0
    %17 = vsyncpa [#allocation8], 0
    // Predicated region
    $region2: #{vae_decoder_forward.1} parent=1 // pred_check
      _
    $region3: #{vae_decoder_forward.1} parent=1 // pred_check_branch
      %19 = sbr.rel (0) target = $region5
    $region4: #{vae_decoder_forward.1} parent=1 // pred_region
      _
    $region5: #{vae_decoder_forward.1} parent=1 // pred_fallthru
      _
    // Predicated region
    $region6: #{vae_decoder_forward.1} parent=1 // pred_check
      _
    $region7: #{vae_decoder_forward.1} parent=1 // pred_check_branch
      %21 = sbr.rel (0) target = $region9
    $region8: #{vae_decoder_forward.1} parent=1 // pred_region
      _
    $region9: #{vae_decoder_forward.1} parent=1 // pred_fallthru
      _
    // Predicated region
    $region10: #{vae_decoder_forward.1} parent=1 // pred_check
      _
    $region11: #{vae_decoder_forward.1} parent=1 // pred_check_branch
      %23 = sbr.rel (0) target = $region13
    $region12: #{vae_decoder_forward.1} parent=1 // pred_region
      %s25 = ssub.s32 4352, 4352
      %26 = vsyncadd [#allocation3], %s25
      %s27 = sshll.u32 [#allocation2], 4
      %s28 = int_to_ptr.vmem [resolvable:$true] %s27
      %33 = dma.hbm_to_vmem [thread:$0]  %s2, 4352, %s28, [#allocation3], 1088, 1088, 68
    $region13: #{vae_decoder_forward.1} parent=1 // pred_fallthru
      _
    // Predicated region
    $region14: #{vae_decoder_forward.1} parent=1 // pred_check
      _
    $region15: #{vae_decoder_forward.1} parent=1 // pred_check_branch
      %35 = sbr.rel (0) target = $region17
    $region16: #{vae_decoder_forward.1} parent=1 // pred_region
      %s37 = ssub.s32 272, 272
      %38 = vsyncadd [#allocation5], %s37
      %s40 = sshll.u32 [#allocation4], 4
      %s41 = int_to_ptr.vmem [resolvable:$true] %s40
      %43 = dma.hbm_to_vmem [thread:$0]  %s3, 272, %s41, [#allocation5]
    $region17: #{vae_decoder_forward.1} parent=1 // pred_fallthru
      _
    // Predicated region
    $region18: #{vae_decoder_forward.1} parent=1 // pred_check
      _
    $region19: #{vae_decoder_forward.1} parent=1 // pred_check_branch
      %45 = sbr.rel (0) target = $region21
    $region20: #{vae_decoder_forward.1} parent=1 // pred_region
      %s47 = ssub.s32 6144, 6144
      %48 = vsyncadd [#allocation5], %s47
      %s49 = sshll.u32 [#allocation6], 4
      %s50 = int_to_ptr.vmem [resolvable:$true] %s49
      %55 = dma.hbm_to_vmem [thread:$0]  %s4, 6144, %s50, [#allocation5], 128, 128, 8
    $region21: #{vae_decoder_forward.1} parent=1 // pred_fallthru
      _
    // Predicated region
    $region22: #{vae_decoder_forward.1} parent=1 // pred_check
      _
    $region23: #{vae_decoder_forward.1} parent=1 // pred_check_branch
      %57 = sbr.rel (0) target = $region25
    $region24: #{vae_decoder_forward.1} parent=1 // pred_region
      _
    $region25: #{vae_decoder_forward.1} parent=1 // pred_fallthru
      _
    // Predicated region
    $region26: #{vae_decoder_forward.1} parent=1 // pred_check
      _
    $region27: #{vae_decoder_forward.1} parent=1 // pred_check_branch
      %59 = sbr.rel (0) target = $region29
    $region28: #{vae_decoder_forward.1} parent=1 // pred_region
      %s61 = ssub.s32 6144, 6144
      %62 = vsyncadd [#allocation8], %s61
      %s63 = sshll.u32 [#allocation7], 4
      %s64 = int_to_ptr.vmem [resolvable:$true] %s63
      %69 = dma.hbm_to_vmem [thread:$0]  %s6, 6144, %s64, [#allocation8], 128, 128, 8
    $region29: #{vae_decoder_forward.1} parent=1 // pred_fallthru
      _
    // Predicated region
    $region30: #{vae_decoder_forward.1} parent=1 // pred_check
      _
    $region31: #{vae_decoder_forward.1} parent=1 // pred_check_branch
      %71 = sbr.rel (0) target = $region33
    $region32: #{vae_decoder_forward.1} parent=1 // pred_region
      _
    $region33: #{vae_decoder_forward.1} parent=1 // pred_fallthru
      _
    // Predicated region
    $region34: #{vae_decoder_forward.1} parent=1 // pred_check
      _
    $region35: #{vae_decoder_forward.1} parent=1 // pred_check_branch
      %73 = sbr.rel (0) target = $region37
    $region36: #{vae_decoder_forward.1} parent=1 // pred_region
      _
    $region37: #{vae_decoder_forward.1} parent=1 // pred_fallthru
      _
    // Predicated region
    $region38: #{vae_decoder_forward.1} parent=1 // pred_check
      _
    $region39: #{vae_decoder_forward.1} parent=1 // pred_check_branch
      %75 = sbr.rel (0) target = $region41
    $region40: #{vae_decoder_forward.1} parent=1 // pred_region
      _
    $region41: #{vae_decoder_forward.1} parent=1 // pred_fallthru
      _
    // Predicated region
    $region42: #{vae_decoder_forward.1} parent=1 // pred_check
      _
    $region43: #{vae_decoder_forward.1} parent=1 // pred_check_branch
      %77 = sbr.rel (0) target = $region45
    $region44: #{vae_decoder_forward.1} parent=1 // pred_region
      %78 = dma.done [#allocation3], 4352
    $region45: #{vae_decoder_forward.1} parent=1 // pred_fallthru
      _
    // Predicated region
    $region46: #{vae_decoder_forward.1} parent=1 // pred_check
      _
    $region47: #{vae_decoder_forward.1} parent=1 // pred_check_branch
      %80 = sbr.rel (0) target = $region49
    $region48: #{vae_decoder_forward.1} parent=1 // pred_region
      %81 = dma.done [#allocation5], 272
    $region49: #{vae_decoder_forward.1} parent=1 // pred_fallthru
      _
    // Predicated region
    $region50: #{vae_decoder_forward.1} parent=1 // pred_check
      _
    $region51: #{vae_decoder_forward.1} parent=1 // pred_check_branch
      %83 = sbr.rel (0) target = $region53
    $region52: #{vae_decoder_forward.1} parent=1 // pred_region
      %84 = dma.done [#allocation5], 6144
    $region53: #{vae_decoder_forward.1} parent=1 // pred_fallthru
      _
    // Predicated region
    $region54: #{vae_decoder_forward.1} parent=1 // pred_check
      _
    $region55: #{vae_decoder_forward.1} parent=1 // pred_check_branch
      %86 = sbr.rel (0) target = $region57
    $region56: #{vae_decoder_forward.1} parent=1 // pred_region
      %87 = dma.done [#allocation8], 6144
    $region57: #{vae_decoder_forward.1} parent=1 // pred_fallthru
      _
    %v89 = vld [vmem:[%s0] sm:$0x3]
    %v90 = vpack.c.bf16 %v89, %v89
    %v91 = vld [vmem:[#allocation2] sm:$0xff]
    %v92 = vld [vmem:[#allocation2 + $0x8] sm:$0xff]
    %v93 = vld [vmem:[#allocation2 + $0x10] sm:$0xff]
    %v94 = vld [vmem:[#allocation2 + $0x18] sm:$0xff]
    %v95 = vld [vmem:[#allocation2 + $0x20] sm:$0xff]
    %v96 = vld [vmem:[#allocation2 + $0x28] sm:$0xff]
    %v97 = vld [vmem:[#allocation2 + $0x30] sm:$0xff]
    %v98 = vld [vmem:[#allocation2 + $0x38] sm:$0xff]
    %v99 = vld [vmem:[#allocation2 + $0x40] sm:$0xf]
    %v100 = vld [vmem:[#allocation2 + $0x44] sm:$0xff]
    %v101 = vld [vmem:[#allocation2 + $0x4c] sm:$0xff]
    %v102 = vld [vmem:[#allocation2 + $0x54] sm:$0xff]
    %v103 = vld [vmem:[#allocation2 + $0x5c] sm:$0xff]
    %v104 = vld [vmem:[#allocation2 + $0x64] sm:$0xff]
    %v105 = vld [vmem:[#allocation2 + $0x6c] sm:$0xff]
    %v106 = vld [vmem:[#allocation2 + $0x74] sm:$0xff]
    %v107 = vld [vmem:[#allocation2 + $0x7c] sm:$0xff]
    %v108 = vld [vmem:[#allocation2 + $0x84] sm:$0xf]
    %v109 = vld [vmem:[#allocation2 + $0x88] sm:$0xff]
    %v110 = vld [vmem:[#allocation2 + $0x90] sm:$0xff]
    %v111 = vld [vmem:[#allocation2 + $0x98] sm:$0xff]
    %v112 = vld [vmem:[#allocation2 + $0xa0] sm:$0xff]
    %v113 = vld [vmem:[#allocation2 + $0xa8] sm:$0xff]
    %v114 = vld [vmem:[#allocation2 + $0xb0] sm:$0xff]
    %v115 = vld [vmem:[#allocation2 + $0xb8] sm:$0xff]
    %v116 = vld [vmem:[#allocation2 + $0xc0] sm:$0xff]
    %v117 = vld [vmem:[#allocation2 + $0xc8] sm:$0xf]
    %v118 = vld [vmem:[#allocation2 + $0xcc] sm:$0xff]
    %v119 = vld [vmem:[#allocation2 + $0xd4] sm:$0xff]
    %v120 = vld [vmem:[#allocation2 + $0xdc] sm:$0xff]
    %v121 = vld [vmem:[#allocation2 + $0xe4] sm:$0xff]
    %v122 = vld [vmem:[#allocation2 + $0xec] sm:$0xff]
    %v123 = vld [vmem:[#allocation2 + $0xf4] sm:$0xff]
    %v124 = vld [vmem:[#allocation2 + $0xfc] sm:$0xff]
    %v125 = vld [vmem:[#allocation2 + $0x104] sm:$0xff]
    %v126 = vld [vmem:[#allocation2 + $0x10c] sm:$0xf]
    %v127 = vld [vmem:[#allocation4] sm:$0xff]
    %v128 = vld [vmem:[#allocation4 + $0x8] sm:$0xff]
    %v129 = vld [vmem:[#allocation4 + $0x10] sm:$0x1]
    %v133 = vlaneseq
    %v134 = vshrl.u32 %v133, 7
    %v135 = vsub.s32 0, %v134
    %v136 = vrot.slane %v127, %v135
    %v137 = vlaneseq
    %v138 = vshrl.u32 %v137, 7
    %v139 = vsub.s32 1, %v138
    %v140 = vrot.slane %v127, %v139
    %v141 = vlaneseq
    %v142 = vshrl.u32 %v141, 7
    %v143 = vsub.s32 2, %v142
    %v144 = vrot.slane %v127, %v143
    %v145 = vlaneseq
    %v146 = vshrl.u32 %v145, 7
    %v147 = vsub.s32 3, %v146
    %v148 = vrot.slane %v127, %v147
    %v149 = vlaneseq
    %v150 = vshrl.u32 %v149, 7
    %v151 = vsub.s32 4, %v150
    %v152 = vrot.slane %v127, %v151
    %v153 = vlaneseq
    %v154 = vshrl.u32 %v153, 7
    %v155 = vsub.s32 5, %v154
    %v156 = vrot.slane %v127, %v155
    %v157 = vlaneseq
    %v158 = vshrl.u32 %v157, 7
    %v159 = vsub.s32 6, %v158
    %v160 = vrot.slane %v127, %v159
    %v161 = vlaneseq
    %v162 = vshrl.u32 %v161, 7
    %v163 = vsub.s32 7, %v162
    %v164 = vrot.slane %v127, %v163
    %v165 = vlaneseq
    %v166 = vshrl.u32 %v165, 7
    %v167 = vsub.s32 0, %v166
    %v168 = vrot.slane %v128, %v167
    %v169 = vlaneseq
    %v170 = vshrl.u32 %v169, 7
    %v171 = vsub.s32 1, %v170
    %v172 = vrot.slane %v128, %v171
    %v173 = vlaneseq
    %v174 = vshrl.u32 %v173, 7
    %v175 = vsub.s32 2, %v174
    %v176 = vrot.slane %v128, %v175
    %v177 = vlaneseq
    %v178 = vshrl.u32 %v177, 7
    %v179 = vsub.s32 3, %v178
    %v180 = vrot.slane %v128, %v179
    %v181 = vlaneseq
    %v182 = vshrl.u32 %v181, 7
    %v183 = vsub.s32 4, %v182
    %v184 = vrot.slane %v128, %v183
    %v185 = vlaneseq
    %v186 = vshrl.u32 %v185, 7
    %v187 = vsub.s32 5, %v186
    %v188 = vrot.slane %v128, %v187
    %v189 = vlaneseq
    %v190 = vshrl.u32 %v189, 7
    %v191 = vsub.s32 6, %v190
    %v192 = vrot.slane %v128, %v191
    %v193 = vlaneseq
    %v194 = vshrl.u32 %v193, 7
    %v195 = vsub.s32 7, %v194
    %v196 = vrot.slane %v128, %v195
    %v197 = vlaneseq
    %v198 = vshrl.u32 %v197, 7
    %v199 = vsub.s32 0, %v198
    %v200 = vrot.slane %v129, %v199
    %v254 = vunpack.c.l.b16 %v91
    %v255 = vunpack.c.h.b16 %v91
    %v256 = vunpack.c.l.b16 %v92
    %v257 = vunpack.c.h.b16 %v92
    %v258 = vunpack.c.l.b16 %v93
    %v259 = vunpack.c.h.b16 %v93
    %v260 = vunpack.c.l.b16 %v94
    %v261 = vunpack.c.h.b16 %v94
    %v262 = vunpack.c.l.b16 %v95
    %v263 = vunpack.c.h.b16 %v95
    %v264 = vunpack.c.l.b16 %v96
    %v265 = vunpack.c.h.b16 %v96
    %v266 = vunpack.c.l.b16 %v97
    %v267 = vunpack.c.h.b16 %v97
    %v268 = vunpack.c.l.b16 %v98
    %v269 = vunpack.c.h.b16 %v98
    %v270 = vunpack.c.l.b16 %v99
    %v271 = vunpack.c.l.b16 %v100
    %v272 = vunpack.c.h.b16 %v100
    %v273 = vunpack.c.l.b16 %v101
    %v274 = vunpack.c.h.b16 %v101
    %v275 = vunpack.c.l.b16 %v102
    %v276 = vunpack.c.h.b16 %v102
    %v277 = vunpack.c.l.b16 %v103
    %v278 = vunpack.c.h.b16 %v103
    %v279 = vunpack.c.l.b16 %v104
    %v280 = vunpack.c.h.b16 %v104
    %v281 = vunpack.c.l.b16 %v105
    %v282 = vunpack.c.h.b16 %v105
    %v283 = vunpack.c.l.b16 %v106
    %v284 = vunpack.c.h.b16 %v106
    %v285 = vunpack.c.l.b16 %v107
    %v286 = vunpack.c.h.b16 %v107
    %v287 = vunpack.c.l.b16 %v108
    %v288 = vunpack.c.l.b16 %v109
    %v289 = vunpack.c.h.b16 %v109
    %v290 = vunpack.c.l.b16 %v110
    %v291 = vunpack.c.h.b16 %v110
    %v292 = vunpack.c.l.b16 %v111
    %v293 = vunpack.c.h.b16 %v111
    %v294 = vunpack.c.l.b16 %v112
    %v295 = vunpack.c.h.b16 %v112
    %v296 = vunpack.c.l.b16 %v113
    %v297 = vunpack.c.h.b16 %v113
    %v298 = vunpack.c.l.b16 %v114
    %v299 = vunpack.c.h.b16 %v114
    %v300 = vunpack.c.l.b16 %v115
    %v301 = vunpack.c.h.b16 %v115
    %v302 = vunpack.c.l.b16 %v116
    %v303 = vunpack.c.h.b16 %v116
    %v304 = vunpack.c.l.b16 %v117
    %v305 = vunpack.c.l.b16 %v118
    %v306 = vunpack.c.h.b16 %v118
    %v307 = vunpack.c.l.b16 %v119
    %v308 = vunpack.c.h.b16 %v119
    %v309 = vunpack.c.l.b16 %v120
    %v310 = vunpack.c.h.b16 %v120
    %v311 = vunpack.c.l.b16 %v121
    %v312 = vunpack.c.h.b16 %v121
    %v313 = vunpack.c.l.b16 %v122
    %v314 = vunpack.c.h.b16 %v122
    %v315 = vunpack.c.l.b16 %v123
    %v316 = vunpack.c.h.b16 %v123
    %v317 = vunpack.c.l.b16 %v124
    %v318 = vunpack.c.h.b16 %v124
    %v319 = vunpack.c.l.b16 %v125
    %v320 = vunpack.c.h.b16 %v125
    %v321 = vunpack.c.l.b16 %v126
    %v322 = vpack.c.b16 %v271, %v254
    %v323 = vpack.c.b16 %v272, %v255
    %v324 = vpack.c.b16 %v273, %v256
    %v325 = vpack.c.b16 %v274, %v257
    %v326 = vpack.c.b16 %v275, %v258
    %v327 = vpack.c.b16 %v276, %v259
    %v328 = vpack.c.b16 %v277, %v260
    %v329 = vpack.c.b16 %v278, %v261
    %v330 = vpack.c.b16 %v279, %v262
    %v331 = vpack.c.b16 %v280, %v263
    %v332 = vpack.c.b16 %v281, %v264
    %v333 = vpack.c.b16 %v282, %v265
    %v334 = vpack.c.b16 %v283, %v266
    %v335 = vpack.c.b16 %v284, %v267
    %v336 = vpack.c.b16 %v285, %v268
    %v337 = vpack.c.b16 %v286, %v269
    %v338 = vpack.c.b16 %v287, %v270
    %v339 = vpack.c.b16 %v305, %v288
    %v340 = vpack.c.b16 %v306, %v289
    %v341 = vpack.c.b16 %v307, %v290
    %v342 = vpack.c.b16 %v308, %v291
    %v343 = vpack.c.b16 %v309, %v292
    %v344 = vpack.c.b16 %v310, %v293
    %v345 = vpack.c.b16 %v311, %v294
    %v346 = vpack.c.b16 %v312, %v295
    %v347 = vpack.c.b16 %v313, %v296
    %v348 = vpack.c.b16 %v314, %v297
    %v349 = vpack.c.b16 %v315, %v298
    %v350 = vpack.c.b16 %v316, %v299
    %v351 = vpack.c.b16 %v317, %v300
    %v352 = vpack.c.b16 %v318, %v301
    %v353 = vpack.c.b16 %v319, %v302
    %v354 = vpack.c.b16 %v320, %v303
    %v355 = vpack.c.b16 %v321, %v304
    %vm390 = vcmask 261120
    %v392 = vsel %vm390, %v90, 0
    %394 = vmatprep.subr.bf16.mxu0 %v323
    %395 = vmatpush1.bf16.msra.mxu0 %v322
    %396 = vmatprep.subr.bf16.mxu0 %v340
    %397 = vmatpush1.bf16.msra.mxu0 %v339
    %398 = vmatprep.subr.bf16.mxu0 0
    %399 = vmatpush1.bf16.msra.mxu0 0
    %400 = vmatprep.subr.bf16.mxu0 0
    %401 = vmatpush1.bf16.msra.mxu0 0
    %402 = vmatprep.subr.bf16.mxu0 0
    %403 = vmatpush1.bf16.msra.mxu0 0
    %404 = vmatprep.subr.bf16.mxu0 0
    %405 = vmatpush1.bf16.msra.mxu0 0
    %406 = vmatprep.subr.bf16.mxu0 0
    %407 = vmatpush1.bf16.msra.mxu0 0
    %408 = vmatprep.subr.bf16.mxu0 0
    %409 = vmatpush1.bf16.msra.mxu0 0
    %410 = vmatprep.subr.bf16.mxu0 0
    %411 = vmatpush1.bf16.msra.mxu0 0
    %412 = vmatprep.subr.bf16.mxu0 0
    %413 = vmatpush1.bf16.msra.mxu0 0
    %414 = vmatprep.subr.bf16.mxu0 0
    %415 = vmatpush1.bf16.msra.mxu0 0
    %416 = vmatprep.subr.bf16.mxu0 0
    %417 = vmatpush1.bf16.msra.mxu0 0
    %418 = vmatprep.subr.bf16.mxu0 0
    %419 = vmatpush1.bf16.msra.mxu0 0
    %420 = vmatprep.subr.bf16.mxu0 0
    %421 = vmatpush1.bf16.msra.mxu0 0
    %422 = vmatprep.subr.bf16.mxu0 0
    %423 = vmatpush1.bf16.msra.mxu0 0
    %424 = vmatprep.subr.bf16.mxu0 0
    %425 = vmatpush1.bf16.msra.mxu0 0
    %426 = vmatprep.mubr.bf16.mxu0 0
    %427 = vmatmul.mubr.bf16.gmra.mrb[0].mxu0 %v392
    %v428 = vpop.f32.mrb[0].mxu0
    %v429 = vadd.f32 %v136, %v428
    %v430 = vpop.f32.mrb[0].mxu0
    %v431 = vadd.f32 %v140, %v430
    %v432 = vpop.f32.mrb[0].mxu0
    %v433 = vpop.f32.mrb[0].mxu0
    %434 = vdwg.mxu0
    %435 = vmatprep.subr.bf16.mxu0 %v325
    %436 = vmatpush1.bf16.msra.mxu0 %v324
    %437 = vmatprep.subr.bf16.mxu0 %v342
    %438 = vmatpush1.bf16.msra.mxu0 %v341
    %439 = vmatprep.subr.bf16.mxu0 0
    %440 = vmatpush1.bf16.msra.mxu0 0
    %441 = vmatprep.subr.bf16.mxu0 0
    %442 = vmatpush1.bf16.msra.mxu0 0
    %443 = vmatprep.subr.bf16.mxu0 0
    %444 = vmatpush1.bf16.msra.mxu0 0
    %445 = vmatprep.subr.bf16.mxu0 0
    %446 = vmatpush1.bf16.msra.mxu0 0
    %447 = vmatprep.subr.bf16.mxu0 0
    %448 = vmatpush1.bf16.msra.mxu0 0
    %449 = vmatprep.subr.bf16.mxu0 0
    %450 = vmatpush1.bf16.msra.mxu0 0
    %451 = vmatprep.subr.bf16.mxu0 0
    %452 = vmatpush1.bf16.msra.mxu0 0
    %453 = vmatprep.subr.bf16.mxu0 0
    %454 = vmatpush1.bf16.msra.mxu0 0
    %455 = vmatprep.subr.bf16.mxu0 0
    %456 = vmatpush1.bf16.msra.mxu0 0
    %457 = vmatprep.subr.bf16.mxu0 0
    %458 = vmatpush1.bf16.msra.mxu0 0
    %459 = vmatprep.subr.bf16.mxu0 0
    %460 = vmatpush1.bf16.msra.mxu0 0
    %461 = vmatprep.subr.bf16.mxu0 0
    %462 = vmatpush1.bf16.msra.mxu0 0
    %463 = vmatprep.subr.bf16.mxu0 0
    %464 = vmatpush1.bf16.msra.mxu0 0
    %465 = vmatprep.subr.bf16.mxu0 0
    %466 = vmatpush1.bf16.msra.mxu0 0
    %467 = vmatprep.mubr.bf16.mxu0 0
    %468 = vmatmul.mubr.bf16.gmra.mrb[0].mxu0 %v392
    %v469 = vpop.f32.mrb[0].mxu0
    %v470 = vadd.f32 %v144, %v469
    %v471 = vpop.f32.mrb[0].mxu0
    %v472 = vadd.f32 %v148, %v471
    %v473 = vpop.f32.mrb[0].mxu0
    %v474 = vpop.f32.mrb[0].mxu0
    %475 = vdwg.mxu0
    %476 = vmatprep.subr.bf16.mxu0 %v327
    %477 = vmatpush1.bf16.msra.mxu0 %v326
    %478 = vmatprep.subr.bf16.mxu0 %v344
    %479 = vmatpush1.bf16.msra.mxu0 %v343
    %480 = vmatprep.subr.bf16.mxu0 0
    %481 = vmatpush1.bf16.msra.mxu0 0
    %482 = vmatprep.subr.bf16.mxu0 0
    %483 = vmatpush1.bf16.msra.mxu0 0
    %484 = vmatprep.subr.bf16.mxu0 0
    %485 = vmatpush1.bf16.msra.mxu0 0
    %486 = vmatprep.subr.bf16.mxu0 0
    %487 = vmatpush1.bf16.msra.mxu0 0
    %488 = vmatprep.subr.bf16.mxu0 0
    %489 = vmatpush1.bf16.msra.mxu0 0
    %490 = vmatprep.subr.bf16.mxu0 0
    %491 = vmatpush1.bf16.msra.mxu0 0
    %492 = vmatprep.subr.bf16.mxu0 0
    %493 = vmatpush1.bf16.msra.mxu0 0
    %494 = vmatprep.subr.bf16.mxu0 0
    %495 = vmatpush1.bf16.msra.mxu0 0
    %496 = vmatprep.subr.bf16.mxu0 0
    %497 = vmatpush1.bf16.msra.mxu0 0
    %498 = vmatprep.subr.bf16.mxu0 0
    %499 = vmatpush1.bf16.msra.mxu0 0
    %500 = vmatprep.subr.bf16.mxu0 0
    %501 = vmatpush1.bf16.msra.mxu0 0
    %502 = vmatprep.subr.bf16.mxu0 0
    %503 = vmatpush1.bf16.msra.mxu0 0
    %504 = vmatprep.subr.bf16.mxu0 0
    %505 = vmatpush1.bf16.msra.mxu0 0
    %506 = vmatprep.subr.bf16.mxu0 0
    %507 = vmatpush1.bf16.msra.mxu0 0
    %508 = vmatprep.mubr.bf16.mxu0 0
    %509 = vmatmul.mubr.bf16.gmra.mrb[0].mxu0 %v392
    %v510 = vpop.f32.mrb[0].mxu0
    %v511 = vadd.f32 %v152, %v510
    %v512 = vpop.f32.mrb[0].mxu0
    %v513 = vadd.f32 %v156, %v512
    %v514 = vpop.f32.mrb[0].mxu0
    %v515 = vpop.f32.mrb[0].mxu0
    %516 = vdwg.mxu0
    %517 = vmatprep.subr.bf16.mxu0 %v329
    %518 = vmatpush1.bf16.msra.mxu0 %v328
    %519 = vmatprep.subr.bf16.mxu0 %v346
    %520 = vmatpush1.bf16.msra.mxu0 %v345
    %521 = vmatprep.subr.bf16.mxu0 0
    %522 = vmatpush1.bf16.msra.mxu0 0
    %523 = vmatprep.subr.bf16.mxu0 0
    %524 = vmatpush1.bf16.msra.mxu0 0
    %525 = vmatprep.subr.bf16.mxu0 0
    %526 = vmatpush1.bf16.msra.mxu0 0
    %527 = vmatprep.subr.bf16.mxu0 0
    %528 = vmatpush1.bf16.msra.mxu0 0
    %529 = vmatprep.subr.bf16.mxu0 0
    %530 = vmatpush1.bf16.msra.mxu0 0
    %531 = vmatprep.subr.bf16.mxu0 0
    %532 = vmatpush1.bf16.msra.mxu0 0
    %533 = vmatprep.subr.bf16.mxu0 0
    %534 = vmatpush1.bf16.msra.mxu0 0
    %535 = vmatprep.subr.bf16.mxu0 0
    %536 = vmatpush1.bf16.msra.mxu0 0
    %537 = vmatprep.subr.bf16.mxu0 0
    %538 = vmatpush1.bf16.msra.mxu0 0
    %539 = vmatprep.subr.bf16.mxu0 0
    %540 = vmatpush1.bf16.msra.mxu0 0
    %541 = vmatprep.subr.bf16.mxu0 0
    %542 = vmatpush1.bf16.msra.mxu0 0
    %543 = vmatprep.subr.bf16.mxu0 0
    %544 = vmatpush1.bf16.msra.mxu0 0
    %545 = vmatprep.subr.bf16.mxu0 0
    %546 = vmatpush1.bf16.msra.mxu0 0
    %547 = vmatprep.subr.bf16.mxu0 0
    %548 = vmatpush1.bf16.msra.mxu0 0
    %549 = vmatprep.mubr.bf16.mxu0 0
    %550 = vmatmul.mubr.bf16.gmra.mrb[0].mxu0 %v392
    %v551 = vpop.f32.mrb[0].mxu0
    %v552 = vadd.f32 %v160, %v551
    %v553 = vpop.f32.mrb[0].mxu0
    %v554 = vadd.f32 %v164, %v553
    %v555 = vpop.f32.mrb[0].mxu0
    %v556 = vpop.f32.mrb[0].mxu0
    %557 = vdwg.mxu0
    %558 = vmatprep.subr.bf16.mxu0 %v331
    %559 = vmatpush1.bf16.msra.mxu0 %v330
    %560 = vmatprep.subr.bf16.mxu0 %v348
    %561 = vmatpush1.bf16.msra.mxu0 %v347
    %562 = vmatprep.subr.bf16.mxu0 0
    %563 = vmatpush1.bf16.msra.mxu0 0
    %564 = vmatprep.subr.bf16.mxu0 0
    %565 = vmatpush1.bf16.msra.mxu0 0
    %566 = vmatprep.subr.bf16.mxu0 0
    %567 = vmatpush1.bf16.msra.mxu0 0
    %568 = vmatprep.subr.bf16.mxu0 0
    %569 = vmatpush1.bf16.msra.mxu0 0
    %570 = vmatprep.subr.bf16.mxu0 0
    %571 = vmatpush1.bf16.msra.mxu0 0
    %572 = vmatprep.subr.bf16.mxu0 0
    %573 = vmatpush1.bf16.msra.mxu0 0
    %574 = vmatprep.subr.bf16.mxu0 0
    %575 = vmatpush1.bf16.msra.mxu0 0
    %576 = vmatprep.subr.bf16.mxu0 0
    %577 = vmatpush1.bf16.msra.mxu0 0
    %578 = vmatprep.subr.bf16.mxu0 0
    %579 = vmatpush1.bf16.msra.mxu0 0
    %580 = vmatprep.subr.bf16.mxu0 0
    %581 = vmatpush1.bf16.msra.mxu0 0
    %582 = vmatprep.subr.bf16.mxu0 0
    %583 = vmatpush1.bf16.msra.mxu0 0
    %584 = vmatprep.subr.bf16.mxu0 0
    %585 = vmatpush1.bf16.msra.mxu0 0
    %586 = vmatprep.subr.bf16.mxu0 0
    %587 = vmatpush1.bf16.msra.mxu0 0
    %588 = vmatprep.subr.bf16.mxu0 0
    %589 = vmatpush1.bf16.msra.mxu0 0
    %590 = vmatprep.mubr.bf16.mxu0 0
    %591 = vmatmul.mubr.bf16.gmra.mrb[0].mxu0 %v392
    %v592 = vpop.f32.mrb[0].mxu0
    %v593 = vadd.f32 %v168, %v592
    %v594 = vpop.f32.mrb[0].mxu0
    %v595 = vadd.f32 %v172, %v594
    %v596 = vpop.f32.mrb[0].mxu0
    %v597 = vpop.f32.mrb[0].mxu0
    %598 = vdwg.mxu0
    %599 = vmatprep.subr.bf16.mxu0 %v333
    %600 = vmatpush1.bf16.msra.mxu0 %v332
    %601 = vmatprep.subr.bf16.mxu0 %v350
    %602 = vmatpush1.bf16.msra.mxu0 %v349
    %603 = vmatprep.subr.bf16.mxu0 0
    %604 = vmatpush1.bf16.msra.mxu0 0
    %605 = vmatprep.subr.bf16.mxu0 0
    %606 = vmatpush1.bf16.msra.mxu0 0
    %607 = vmatprep.subr.bf16.mxu0 0
    %608 = vmatpush1.bf16.msra.mxu0 0
    %609 = vmatprep.subr.bf16.mxu0 0
    %610 = vmatpush1.bf16.msra.mxu0 0
    %611 = vmatprep.subr.bf16.mxu0 0
    %612 = vmatpush1.bf16.msra.mxu0 0
    %613 = vmatprep.subr.bf16.mxu0 0
    %614 = vmatpush1.bf16.msra.mxu0 0
    %615 = vmatprep.subr.bf16.mxu0 0
    %616 = vmatpush1.bf16.msra.mxu0 0
    %617 = vmatprep.subr.bf16.mxu0 0
    %618 = vmatpush1.bf16.msra.mxu0 0
    %619 = vmatprep.subr.bf16.mxu0 0
    %620 = vmatpush1.bf16.msra.mxu0 0
    %621 = vmatprep.subr.bf16.mxu0 0
    %622 = vmatpush1.bf16.msra.mxu0 0
    %623 = vmatprep.subr.bf16.mxu0 0
    %624 = vmatpush1.bf16.msra.mxu0 0
    %625 = vmatprep.subr.bf16.mxu0 0
    %626 = vmatpush1.bf16.msra.mxu0 0
    %627 = vmatprep.subr.bf16.mxu0 0
    %628 = vmatpush1.bf16.msra.mxu0 0
    %629 = vmatprep.subr.bf16.mxu0 0
    %630 = vmatpush1.bf16.msra.mxu0 0
    %631 = vmatprep.mubr.bf16.mxu0 0
    %632 = vmatmul.mubr.bf16.gmra.mrb[0].mxu0 %v392
    %v633 = vpop.f32.mrb[0].mxu0
    %v634 = vadd.f32 %v176, %v633
    %v635 = vpop.f32.mrb[0].mxu0
    %v636 = vadd.f32 %v180, %v635
    %v637 = vpop.f32.mrb[0].mxu0
    %v638 = vpop.f32.mrb[0].mxu0
    %639 = vdwg.mxu0
    %640 = vmatprep.subr.bf16.mxu0 %v335
    %641 = vmatpush1.bf16.msra.mxu0 %v334
    %642 = vmatprep.subr.bf16.mxu0 %v352
    %643 = vmatpush1.bf16.msra.mxu0 %v351
    %644 = vmatprep.subr.bf16.mxu0 0
    %645 = vmatpush1.bf16.msra.mxu0 0
    %646 = vmatprep.subr.bf16.mxu0 0
    %647 = vmatpush1.bf16.msra.mxu0 0
    %648 = vmatprep.subr.bf16.mxu0 0
    %649 = vmatpush1.bf16.msra.mxu0 0
    %650 = vmatprep.subr.bf16.mxu0 0
    %651 = vmatpush1.bf16.msra.mxu0 0
    %652 = vmatprep.subr.bf16.mxu0 0
    %653 = vmatpush1.bf16.msra.mxu0 0
    %654 = vmatprep.subr.bf16.mxu0 0
    %655 = vmatpush1.bf16.msra.mxu0 0
    %656 = vmatprep.subr.bf16.mxu0 0
    %657 = vmatpush1.bf16.msra.mxu0 0
    %658 = vmatprep.subr.bf16.mxu0 0
    %659 = vmatpush1.bf16.msra.mxu0 0
    %660 = vmatprep.subr.bf16.mxu0 0
    %661 = vmatpush1.bf16.msra.mxu0 0
    %662 = vmatprep.subr.bf16.mxu0 0
    %663 = vmatpush1.bf16.msra.mxu0 0
    %664 = vmatprep.subr.bf16.mxu0 0
    %665 = vmatpush1.bf16.msra.mxu0 0
    %666 = vmatprep.subr.bf16.mxu0 0
    %667 = vmatpush1.bf16.msra.mxu0 0
    %668 = vmatprep.subr.bf16.mxu0 0
    %669 = vmatpush1.bf16.msra.mxu0 0
    %670 = vmatprep.subr.bf16.mxu0 0
    %671 = vmatpush1.bf16.msra.mxu0 0
    %672 = vmatprep.mubr.bf16.mxu0 0
    %673 = vmatmul.mubr.bf16.gmra.mrb[0].mxu0 %v392
    %v674 = vpop.f32.mrb[0].mxu0
    %v675 = vadd.f32 %v184, %v674
    %v676 = vpop.f32.mrb[0].mxu0
    %v677 = vadd.f32 %v188, %v676
    %v678 = vpop.f32.mrb[0].mxu0
    %v679 = vpop.f32.mrb[0].mxu0
    %680 = vdwg.mxu0
    %681 = vmatprep.subr.bf16.mxu0 %v337
    %682 = vmatpush1.bf16.msra.mxu0 %v336
    %683 = vmatprep.subr.bf16.mxu0 %v354
    %684 = vmatpush1.bf16.msra.mxu0 %v353
    %685 = vmatprep.subr.bf16.mxu0 0
    %686 = vmatpush1.bf16.msra.mxu0 0
    %687 = vmatprep.subr.bf16.mxu0 0
    %688 = vmatpush1.bf16.msra.mxu0 0
    %689 = vmatprep.subr.bf16.mxu0 0
    %690 = vmatpush1.bf16.msra.mxu0 0
    %691 = vmatprep.subr.bf16.mxu0 0
    %692 = vmatpush1.bf16.msra.mxu0 0
    %693 = vmatprep.subr.bf16.mxu0 0
    %694 = vmatpush1.bf16.msra.mxu0 0
    %695 = vmatprep.subr.bf16.mxu0 0
    %696 = vmatpush1.bf16.msra.mxu0 0
    %697 = vmatprep.subr.bf16.mxu0 0
    %698 = vmatpush1.bf16.msra.mxu0 0
    %699 = vmatprep.subr.bf16.mxu0 0
    %700 = vmatpush1.bf16.msra.mxu0 0
    %701 = vmatprep.subr.bf16.mxu0 0
    %702 = vmatpush1.bf16.msra.mxu0 0
    %703 = vmatprep.subr.bf16.mxu0 0
    %704 = vmatpush1.bf16.msra.mxu0 0
    %705 = vmatprep.subr.bf16.mxu0 0
    %706 = vmatpush1.bf16.msra.mxu0 0
    %707 = vmatprep.subr.bf16.mxu0 0
    %708 = vmatpush1.bf16.msra.mxu0 0
    %709 = vmatprep.subr.bf16.mxu0 0
    %710 = vmatpush1.bf16.msra.mxu0 0
    %711 = vmatprep.subr.bf16.mxu0 0
    %712 = vmatpush1.bf16.msra.mxu0 0
    %713 = vmatprep.mubr.bf16.mxu0 0
    %714 = vmatmul.mubr.bf16.gmra.mrb[0].mxu0 %v392
    %v715 = vpop.f32.mrb[0].mxu0
    %v716 = vadd.f32 %v192, %v715
    %v717 = vpop.f32.mrb[0].mxu0
    %v718 = vadd.f32 %v196, %v717
    %v719 = vpop.f32.mrb[0].mxu0
    %v720 = vpop.f32.mrb[0].mxu0
    %721 = vdwg.mxu0
    %722 = vmatprep.subr.bf16.mxu0 0
    %723 = vmatpush1.bf16.msra.mxu0 %v338
    %724 = vmatprep.subr.bf16.mxu0 0
    %725 = vmatpush1.bf16.msra.mxu0 %v355
    %726 = vmatprep.subr.bf16.mxu0 0
    %727 = vmatpush1.bf16.msra.mxu0 0
    %728 = vmatprep.subr.bf16.mxu0 0
    %729 = vmatpush1.bf16.msra.mxu0 0
    %730 = vmatprep.subr.bf16.mxu0 0
    %731 = vmatpush1.bf16.msra.mxu0 0
    %732 = vmatprep.subr.bf16.mxu0 0
    %733 = vmatpush1.bf16.msra.mxu0 0
    %734 = vmatprep.subr.bf16.mxu0 0
    %735 = vmatpush1.bf16.msra.mxu0 0
    %736 = vmatprep.subr.bf16.mxu0 0
    %737 = vmatpush1.bf16.msra.mxu0 0
    %738 = vmatprep.subr.bf16.mxu0 0
    %739 = vmatpush1.bf16.msra.mxu0 0
    %740 = vmatprep.subr.bf16.mxu0 0
    %741 = vmatpush1.bf16.msra.mxu0 0
    %742 = vmatprep.subr.bf16.mxu0 0
    %743 = vmatpush1.bf16.msra.mxu0 0
    %744 = vmatprep.subr.bf16.mxu0 0
    %745 = vmatpush1.bf16.msra.mxu0 0
    %746 = vmatprep.subr.bf16.mxu0 0
    %747 = vmatpush1.bf16.msra.mxu0 0
    %748 = vmatprep.subr.bf16.mxu0 0
    %749 = vmatpush1.bf16.msra.mxu0 0
    %750 = vmatprep.subr.bf16.mxu0 0
    %751 = vmatpush1.bf16.msra.mxu0 0
    %752 = vmatprep.subr.bf16.mxu0 0
    %753 = vmatpush1.bf16.msra.mxu0 0
    %754 = vmatprep.mubr.bf16.mxu0 0
    %755 = vmatmul.mubr.bf16.gmra.mrb[0].mxu0 %v392
    %v756 = vpop.f32.mrb[0].mxu0
    %v757 = vadd.f32 %v200, %v756
    %v758 = vpop.f32.mrb[0].mxu0
    %v759 = vpop.f32.mrb[0].mxu0
    %v760 = vpop.f32.mrb[0].mxu0
    %761 = vdwg.mxu0
    %v763 = vrot.slane %v431, 7
    %v766 = vrot.slane %v470, 6
    %v769 = vrot.slane %v472, 5
    %v772 = vrot.slane %v511, 4
    %v775 = vrot.slane %v513, 3
    %v778 = vrot.slane %v552, 2
    %v781 = vrot.slane %v554, 1
    %v784 = vrot.slane %v595, 7
    %v787 = vrot.slane %v634, 6
    %v790 = vrot.slane %v636, 5
    %v793 = vrot.slane %v675, 4
    %v796 = vrot.slane %v677, 3
    %v799 = vrot.slane %v716, 2
    %v802 = vrot.slane %v718, 1
    %vm804 = vcmask 1040384
    %v805 = vsel %vm804, %v429, %v763
    %vm806 = vcmask 1041408
    %v807 = vsel %vm806, %v805, %v766
    %vm808 = vcmask 1042432
    %v809 = vsel %vm808, %v807, %v769
    %vm810 = vcmask 1043456
    %v811 = vsel %vm810, %v809, %v772
    %vm812 = vcmask 1044480
    %v813 = vsel %vm812, %v811, %v775
    %vm814 = vcmask 1045504
    %v815 = vsel %vm814, %v813, %v778
    %vm816 = vcmask 1046528
    %v817 = vsel %vm816, %v815, %v781
    %v818 = vsel %vm804, %v593, %v784
    %v819 = vsel %vm806, %v818, %v787
    %v820 = vsel %vm808, %v819, %v790
    %v821 = vsel %vm810, %v820, %v793
    %v822 = vsel %vm812, %v821, %v796
    %v823 = vsel %vm814, %v822, %v799
    %v824 = vsel %vm816, %v823, %v802
    %v825 = vsel %vm804, %v757, %v429
    %v826 = vsel %vm806, %v825, %v763
    %v827 = vsel %vm808, %v826, %v766
    %v828 = vsel %vm810, %v827, %v769
    %v829 = vsel %vm812, %v828, %v772
    %v830 = vsel %vm814, %v829, %v775
    %v831 = vsel %vm816, %v830, %v778
    %v832 = vsel %vm804, %v781, %v593
    %v833 = vsel %vm806, %v832, %v784
    %v834 = vsel %vm808, %v833, %v787
    %v835 = vsel %vm810, %v834, %v790
    %v836 = vsel %vm812, %v835, %v793
    %v837 = vsel %vm814, %v836, %v796
    %v838 = vsel %vm816, %v837, %v799
    %v839 = vsel %vm804, %v802, %v757
    %v840 = vld [vmem:[%s1] sm:$0xff]
    %v841 = vld [vmem:[%s1 + $0x8] sm:$0xff]
    %v842 = vld [vmem:[%s1 + $0x10] sm:$0xff]
    %v843 = vld [vmem:[%s1 + $0x18] sm:$0xff]
    %v844 = vld [vmem:[%s1 + $0x20] sm:$0x3]
    %v845 = vlaneseq
    %v846 = vshrl.u32 %v845, 7
    %v847 = vadd.s32 %v846, 8
    %v848 = vadd.s32 %v846, 16
    %v849 = vadd.s32 %v846, 24
    %v850 = vadd.s32 %v846, 32
    %vm851 = vcmp.eq.s32.totalorder %v846, 0
    %vm852 = vcmp.eq.s32.totalorder %v847, 0
    %vm853 = vcmp.eq.s32.totalorder %v848, 0
    %vm854 = vcmp.eq.s32.totalorder %v849, 0
    %vm855 = vcmp.eq.s32.totalorder %v850, 0
    %vm856 = vcmp.eq.s32.totalorder %v846, 16
    %vm857 = vcmp.eq.s32.totalorder %v847, 16
    %vm858 = vcmp.eq.s32.totalorder %v848, 16
    %vm859 = vcmp.eq.s32.totalorder %v849, 16
    %vm860 = vcmp.eq.s32.totalorder %v850, 16
    %vm861 = vcmp.eq.s32.totalorder %v846, 17
    %vm862 = vcmp.eq.s32.totalorder %v847, 17
    %vm863 = vcmp.eq.s32.totalorder %v848, 17
    %vm864 = vcmp.eq.s32.totalorder %v849, 17
    %vm865 = vcmp.eq.s32.totalorder %v850, 17
    %vm866 = vmor %vm851, %vm861
    %vm867 = vmor %vm852, %vm862
    %vm868 = vmor %vm853, %vm863
    %vm869 = vmor %vm854, %vm864
    %vm870 = vmor %vm855, %vm865
    %vm871 = vcmp.eq.s32.totalorder %v846, 33
    %vm872 = vcmp.eq.s32.totalorder %v847, 33
    %vm873 = vcmp.eq.s32.totalorder %v848, 33
    %vm874 = vcmp.eq.s32.totalorder %v849, 33
    %vm875 = vcmp.eq.s32.totalorder %v850, 33
    %vm876 = vmor %vm856, %vm871
    %vm877 = vmor %vm857, %vm872
    %vm878 = vmor %vm858, %vm873
    %vm879 = vmor %vm859, %vm874
    %vm880 = vmor %vm860, %vm875
    %v886 = vrot.slane %v817, 7
    %v887 = vrot.slane %v824, 7
    %v888 = vsel %vm804, %v886, %v887
    %v889 = vrot.slane %v831, 7
    %v890 = vsel %vm804, %v887, %v889
    %v891 = vrot.slane %v838, 7
    %v892 = vsel %vm804, %v889, %v891
    %v893 = vrot.slane %v839, 7
    %v894 = vsel %vm804, %v891, %v893
    %v900 = vsel %vm804, 0.0, %v886
    %v901 = vsel %vm866, 0.0, %v900
    %v902 = vsel %vm867, 0.0, %v888
    %v903 = vsel %vm868, 0.0, %v890
    %v904 = vsel %vm869, 0.0, %v892
    %v905 = vsel %vm870, 0.0, %v894
    %v906 = vrot.slane %v817, 1
    %v907 = vrot.slane %v824, 1
    %v908 = vsel %vm816, %v906, %v907
    %v909 = vrot.slane %v831, 1
    %v910 = vsel %vm816, %v907, %v909
    %v911 = vrot.slane %v838, 1
    %v912 = vsel %vm816, %v909, %v911
    %v913 = vrot.slane %v839, 1
    %v914 = vsel %vm816, %v911, %v913
    %v920 = vsel %vm804, %v913, 0.0
    %v921 = vsel %vm876, 0.0, %v908
    %v922 = vsel %vm877, 0.0, %v910
    %v923 = vsel %vm878, 0.0, %v912
    %v924 = vsel %vm879, 0.0, %v914
    %v925 = vsel %vm880, 0.0, %v920
    %v926 = vpack.c.bf16 %v902, %v901
    %v927 = vpack.c.bf16 %v824, %v817
    %v928 = vpack.c.bf16 %v922, %v921
    %v929 = vpack.c.bf16 %v904, %v903
    %v930 = vpack.c.bf16 %v838, %v831
    %v931 = vpack.c.bf16 %v924, %v923
    %v932 = vpack.c.bf16 %v905, %v905
    %v933 = vpack.c.bf16 %v839, %v839
    %v934 = vpack.c.bf16 %v925, %v925
    %v935 = vld [vmem:[#allocation6] sm:$0xff]
    %v936 = vld [vmem:[#allocation6 + $0x8] sm:$0xff]
    %v937 = vld [vmem:[#allocation6 + $0x10] sm:$0xff]
    %v938 = vld [vmem:[#allocation6 + $0x18] sm:$0xff]
    %v939 = vld [vmem:[#allocation6 + $0x20] sm:$0xff]
    %v940 = vld [vmem:[#allocation6 + $0x28] sm:$0xff]
    %v941 = vld [vmem:[#allocation6 + $0x30] sm:$0xff]
    %v942 = vld [vmem:[#allocation6 + $0x38] sm:$0xff]
    %v943 = vld [vmem:[#allocation6 + $0x40] sm:$0xff]
    %v944 = vld [vmem:[#allocation6 + $0x48] sm:$0xff]
    %v945 = vld [vmem:[#allocation6 + $0x50] sm:$0xff]
    %v946 = vld [vmem:[#allocation6 + $0x58] sm:$0xff]
    %v947 = vld [vmem:[#allocation6 + $0x60] sm:$0xff]
    %v948 = vld [vmem:[#allocation6 + $0x68] sm:$0xff]
    %v949 = vld [vmem:[#allocation6 + $0x70] sm:$0xff]
    %v950 = vld [vmem:[#allocation6 + $0x78] sm:$0xff]
    %v951 = vld [vmem:[#allocation6 + $0x80] sm:$0xff]
    %v952 = vld [vmem:[#allocation6 + $0x88] sm:$0xff]
    %v953 = vld [vmem:[#allocation6 + $0x90] sm:$0xff]
    %v954 = vld [vmem:[#allocation6 + $0x98] sm:$0xff]
    %v955 = vld [vmem:[#allocation6 + $0xa0] sm:$0xff]
    %v956 = vld [vmem:[#allocation6 + $0xa8] sm:$0xff]
    %v957 = vld [vmem:[#allocation6 + $0xb0] sm:$0xff]
    %v958 = vld [vmem:[#allocation6 + $0xb8] sm:$0xff]
    %v959 = vld [vmem:[#allocation6 + $0xc0] sm:$0xff]
    %v960 = vld [vmem:[#allocation6 + $0xc8] sm:$0xff]
    %v961 = vld [vmem:[#allocation6 + $0xd0] sm:$0xff]
    %v962 = vld [vmem:[#allocation6 + $0xd8] sm:$0xff]
    %v963 = vld [vmem:[#allocation6 + $0xe0] sm:$0xff]
    %v964 = vld [vmem:[#allocation6 + $0xe8] sm:$0xff]
    %v965 = vld [vmem:[#allocation6 + $0xf0] sm:$0xff]
    %v966 = vld [vmem:[#allocation6 + $0xf8] sm:$0xff]
    %v967 = vld [vmem:[#allocation6 + $0x100] sm:$0xff]
    %v968 = vld [vmem:[#allocation6 + $0x108] sm:$0xff]
    %v969 = vld [vmem:[#allocation6 + $0x110] sm:$0xff]
    %v970 = vld [vmem:[#allocation6 + $0x118] sm:$0xff]
    %v971 = vld [vmem:[#allocation6 + $0x120] sm:$0xff]
    %v972 = vld [vmem:[#allocation6 + $0x128] sm:$0xff]
    %v973 = vld [vmem:[#allocation6 + $0x130] sm:$0xff]
    %v974 = vld [vmem:[#allocation6 + $0x138] sm:$0xff]
    %v975 = vld [vmem:[#allocation6 + $0x140] sm:$0xff]
    %v976 = vld [vmem:[#allocation6 + $0x148] sm:$0xff]
    %v977 = vld [vmem:[#allocation6 + $0x150] sm:$0xff]
    %v978 = vld [vmem:[#allocation6 + $0x158] sm:$0xff]
    %v979 = vld [vmem:[#allocation6 + $0x160] sm:$0xff]
    %v980 = vld [vmem:[#allocation6 + $0x168] sm:$0xff]
    %v981 = vld [vmem:[#allocation6 + $0x170] sm:$0xff]
    %v982 = vld [vmem:[#allocation6 + $0x178] sm:$0xff]
    %v983 = vld [vmem:[%s5] sm:$0x3]
    %v985 = vlaneseq
    %v986 = vshrl.u32 %v985, 7
    %v987 = vsub.s32 0, %v986
    %v988 = vrot.slane %v983, %v987
    %v989 = vlaneseq
    %v990 = vshrl.u32 %v989, 7
    %v991 = vsub.s32 1, %v990
    %v992 = vrot.slane %v983, %v991
    %v1043 = vunpack.c.l.b16 %v935
    %v1044 = vunpack.c.h.b16 %v935
    %v1045 = vunpack.c.l.b16 %v936
    %v1046 = vunpack.c.h.b16 %v936
    %v1047 = vunpack.c.l.b16 %v937
    %v1048 = vunpack.c.h.b16 %v937
    %v1049 = vunpack.c.l.b16 %v938
    %v1050 = vunpack.c.h.b16 %v938
    %v1051 = vunpack.c.l.b16 %v939
    %v1052 = vunpack.c.h.b16 %v939
    %v1053 = vunpack.c.l.b16 %v940
    %v1054 = vunpack.c.h.b16 %v940
    %v1055 = vunpack.c.l.b16 %v941
    %v1056 = vunpack.c.h.b16 %v941
    %v1057 = vunpack.c.l.b16 %v942
    %v1058 = vunpack.c.h.b16 %v942
    %v1059 = vunpack.c.l.b16 %v943
    %v1060 = vunpack.c.h.b16 %v943
    %v1061 = vunpack.c.l.b16 %v944
    %v1062 = vunpack.c.h.b16 %v944
    %v1063 = vunpack.c.l.b16 %v945
    %v1064 = vunpack.c.h.b16 %v945
    %v1065 = vunpack.c.l.b16 %v946
    %v1066 = vunpack.c.h.b16 %v946
    %v1067 = vunpack.c.l.b16 %v947
    %v1068 = vunpack.c.h.b16 %v947
    %v1069 = vunpack.c.l.b16 %v948
    %v1070 = vunpack.c.h.b16 %v948
    %v1071 = vunpack.c.l.b16 %v949
    %v1072 = vunpack.c.h.b16 %v949
    %v1073 = vunpack.c.l.b16 %v950
    %v1074 = vunpack.c.h.b16 %v950
    %v1075 = vunpack.c.l.b16 %v951
    %v1076 = vunpack.c.h.b16 %v951
    %v1077 = vunpack.c.l.b16 %v952
    %v1078 = vunpack.c.h.b16 %v952
    %v1079 = vunpack.c.l.b16 %v953
    %v1080 = vunpack.c.h.b16 %v953
    %v1081 = vunpack.c.l.b16 %v954
    %v1082 = vunpack.c.h.b16 %v954
    %v1083 = vunpack.c.l.b16 %v955
    %v1084 = vunpack.c.h.b16 %v955
    %v1085 = vunpack.c.l.b16 %v956
    %v1086 = vunpack.c.h.b16 %v956
    %v1087 = vunpack.c.l.b16 %v957
    %v1088 = vunpack.c.h.b16 %v957
    %v1089 = vunpack.c.l.b16 %v958
    %v1090 = vunpack.c.h.b16 %v958
    %v1091 = vunpack.c.l.b16 %v959
    %v1092 = vunpack.c.h.b16 %v959
    %v1093 = vunpack.c.l.b16 %v960
    %v1094 = vunpack.c.h.b16 %v960
    %v1095 = vunpack.c.l.b16 %v961
    %v1096 = vunpack.c.h.b16 %v961
    %v1097 = vunpack.c.l.b16 %v962
    %v1098 = vunpack.c.h.b16 %v962
    %v1099 = vunpack.c.l.b16 %v963
    %v1100 = vunpack.c.h.b16 %v963
    %v1101 = vunpack.c.l.b16 %v964
    %v1102 = vunpack.c.h.b16 %v964
    %v1103 = vunpack.c.l.b16 %v965
    %v1104 = vunpack.c.h.b16 %v965
    %v1105 = vunpack.c.l.b16 %v966
    %v1106 = vunpack.c.h.b16 %v966
    %v1107 = vunpack.c.l.b16 %v967
    %v1108 = vunpack.c.h.b16 %v967
    %v1109 = vunpack.c.l.b16 %v968
    %v1110 = vunpack.c.h.b16 %v968
    %v1111 = vunpack.c.l.b16 %v969
    %v1112 = vunpack.c.h.b16 %v969
    %v1113 = vunpack.c.l.b16 %v970
    %v1114 = vunpack.c.h.b16 %v970
    %v1115 = vunpack.c.l.b16 %v971
    %v1116 = vunpack.c.h.b16 %v971
    %v1117 = vunpack.c.l.b16 %v972
    %v1118 = vunpack.c.h.b16 %v972
    %v1119 = vunpack.c.l.b16 %v973
    %v1120 = vunpack.c.h.b16 %v973
    %v1121 = vunpack.c.l.b16 %v974
    %v1122 = vunpack.c.h.b16 %v974
    %v1123 = vunpack.c.l.b16 %v975
    %v1124 = vunpack.c.h.b16 %v975
    %v1125 = vunpack.c.l.b16 %v976
    %v1126 = vunpack.c.h.b16 %v976
    %v1127 = vunpack.c.l.b16 %v977
    %v1128 = vunpack.c.h.b16 %v977
    %v1129 = vunpack.c.l.b16 %v978
    %v1130 = vunpack.c.h.b16 %v978
    %v1131 = vunpack.c.l.b16 %v979
    %v1132 = vunpack.c.h.b16 %v979
    %v1133 = vunpack.c.l.b16 %v980
    %v1134 = vunpack.c.h.b16 %v980
    %v1135 = vunpack.c.l.b16 %v981
    %v1136 = vunpack.c.h.b16 %v981
    %v1137 = vunpack.c.l.b16 %v982
    %v1138 = vunpack.c.h.b16 %v982
    %v1139 = vpack.c.b16 %v1045, %v1043
    %v1140 = vpack.c.b16 %v1046, %v1044
    %v1141 = vpack.c.b16 %v1049, %v1047
    %v1142 = vpack.c.b16 %v1050, %v1048
    %v1143 = vpack.c.b16 %v1053, %v1051
    %v1144 = vpack.c.b16 %v1054, %v1052
    %v1145 = vpack.c.b16 %v1057, %v1055
    %v1146 = vpack.c.b16 %v1058, %v1056
    %v1147 = vpack.c.b16 %v1061, %v1059
    %v1148 = vpack.c.b16 %v1062, %v1060
    %v1149 = vpack.c.b16 %v1065, %v1063
    %v1150 = vpack.c.b16 %v1066, %v1064
    %v1151 = vpack.c.b16 %v1069, %v1067
    %v1152 = vpack.c.b16 %v1070, %v1068
    %v1153 = vpack.c.b16 %v1073, %v1071
    %v1154 = vpack.c.b16 %v1074, %v1072
    %v1155 = vpack.c.b16 %v1077, %v1075
    %v1156 = vpack.c.b16 %v1078, %v1076
    %v1157 = vpack.c.b16 %v1081, %v1079
    %v1158 = vpack.c.b16 %v1082, %v1080
    %v1159 = vpack.c.b16 %v1085, %v1083
    %v1160 = vpack.c.b16 %v1086, %v1084
    %v1161 = vpack.c.b16 %v1089, %v1087
    %v1162 = vpack.c.b16 %v1090, %v1088
    %v1163 = vpack.c.b16 %v1093, %v1091
    %v1164 = vpack.c.b16 %v1094, %v1092
    %v1165 = vpack.c.b16 %v1097, %v1095
    %v1166 = vpack.c.b16 %v1098, %v1096
    %v1167 = vpack.c.b16 %v1101, %v1099
    %v1168 = vpack.c.b16 %v1102, %v1100
    %v1169 = vpack.c.b16 %v1105, %v1103
    %v1170 = vpack.c.b16 %v1106, %v1104
    %v1171 = vpack.c.b16 %v1109, %v1107
    %v1172 = vpack.c.b16 %v1110, %v1108
    %v1173 = vpack.c.b16 %v1113, %v1111
    %v1174 = vpack.c.b16 %v1114, %v1112
    %v1175 = vpack.c.b16 %v1117, %v1115
    %v1176 = vpack.c.b16 %v1118, %v1116
    %v1177 = vpack.c.b16 %v1121, %v1119
    %v1178 = vpack.c.b16 %v1122, %v1120
    %v1179 = vpack.c.b16 %v1125, %v1123
    %v1180 = vpack.c.b16 %v1126, %v1124
    %v1181 = vpack.c.b16 %v1129, %v1127
    %v1182 = vpack.c.b16 %v1130, %v1128
    %v1183 = vpack.c.b16 %v1133, %v1131
    %v1184 = vpack.c.b16 %v1134, %v1132
    %v1185 = vpack.c.b16 %v1137, %v1135
    %v1186 = vpack.c.b16 %v1138, %v1136
    %1235 = vmatprep.subr.bf16.mxu0 %v1140
    %1236 = vmatpush1.bf16.msra.mxu0 %v1139
    %1237 = vmatprep.subr.bf16.mxu0 %v1142
    %1238 = vmatpush1.bf16.msra.mxu0 %v1141
    %1239 = vmatprep.subr.bf16.mxu0 %v1144
    %1240 = vmatpush1.bf16.msra.mxu0 %v1143
    %1241 = vmatprep.subr.bf16.mxu0 %v1146
    %1242 = vmatpush1.bf16.msra.mxu0 %v1145
    %1243 = vmatprep.subr.bf16.mxu0 %v1148
    %1244 = vmatpush1.bf16.msra.mxu0 %v1147
    %1245 = vmatprep.subr.bf16.mxu0 %v1150
    %1246 = vmatpush1.bf16.msra.mxu0 %v1149
    %1247 = vmatprep.subr.bf16.mxu0 %v1152
    %1248 = vmatpush1.bf16.msra.mxu0 %v1151
    %1249 = vmatprep.subr.bf16.mxu0 %v1154
    %1250 = vmatpush1.bf16.msra.mxu0 %v1153
    %1251 = vmatprep.subr.bf16.mxu0 %v1156
    %1252 = vmatpush1.bf16.msra.mxu0 %v1155
    %1253 = vmatprep.subr.bf16.mxu0 %v1158
    %1254 = vmatpush1.bf16.msra.mxu0 %v1157
    %1255 = vmatprep.subr.bf16.mxu0 %v1160
    %1256 = vmatpush1.bf16.msra.mxu0 %v1159
    %1257 = vmatprep.subr.bf16.mxu0 %v1162
    %1258 = vmatpush1.bf16.msra.mxu0 %v1161
    %1259 = vmatprep.subr.bf16.mxu0 %v1164
    %1260 = vmatpush1.bf16.msra.mxu0 %v1163
    %1261 = vmatprep.subr.bf16.mxu0 %v1166
    %1262 = vmatpush1.bf16.msra.mxu0 %v1165
    %1263 = vmatprep.subr.bf16.mxu0 %v1168
    %1264 = vmatpush1.bf16.msra.mxu0 %v1167
    %1265 = vmatprep.subr.bf16.mxu0 %v1170
    %1266 = vmatpush1.bf16.msra.mxu0 %v1169
    %1267 = vmatprep.mubr.bf16.mxu0 %v927
    %1268 = vmatmul.mubr.bf16.gmra.mrb[0].mxu0 %v926
    %v1269 = vpop.f32.mrb[0].mxu0
    %v1270 = vadd.f32 %v988, %v1269
    %v1271 = vpop.f32.mrb[0].mxu0
    %v1272 = vadd.f32 %v992, %v1271
    %v1273 = vpop.f32.mrb[0].mxu0
    %v1274 = vadd.f32 %v988, %v1273
    %v1275 = vpop.f32.mrb[0].mxu0
    %v1276 = vadd.f32 %v992, %v1275
    %1277 = vmatprep.mubr.bf16.mxu0 %v930
    %1278 = vmatmul.mubr.bf16.gmra.mrb[0].mxu0 %v929
    %v1279 = vpop.f32.mrb[0].mxu0
    %v1280 = vadd.f32 %v988, %v1279
    %v1281 = vpop.f32.mrb[0].mxu0
    %v1282 = vadd.f32 %v992, %v1281
    %v1283 = vpop.f32.mrb[0].mxu0
    %v1284 = vadd.f32 %v988, %v1283
    %v1285 = vpop.f32.mrb[0].mxu0
    %v1286 = vadd.f32 %v992, %v1285
    %1287 = vmatprep.mubr.bf16.mxu0 %v933
    %1288 = vmatmul.mubr.bf16.gmra.mrb[0].mxu0 %v932
    %v1289 = vpop.f32.mrb[0].mxu0
    %v1290 = vadd.f32 %v988, %v1289
    %v1291 = vpop.f32.mrb[0].mxu0
    %v1292 = vadd.f32 %v992, %v1291
    %v1293 = vpop.f32.mrb[0].mxu0
    %v1294 = vpop.f32.mrb[0].mxu0
    %1295 = vdwg.mxu0
    %1296 = vmatprep.subr.bf16.mxu0 %v1172
    %1297 = vmatpush1.bf16.msra.mxu0 %v1171
    %1298 = vmatprep.subr.bf16.mxu0 %v1174
    %1299 = vmatpush1.bf16.msra.mxu0 %v1173
    %1300 = vmatprep.subr.bf16.mxu0 %v1176
    %1301 = vmatpush1.bf16.msra.mxu0 %v1175
    %1302 = vmatprep.subr.bf16.mxu0 %v1178
    %1303 = vmatpush1.bf16.msra.mxu0 %v1177
    %1304 = vmatprep.subr.bf16.mxu0 %v1180
    %1305 = vmatpush1.bf16.msra.mxu0 %v1179
    %1306 = vmatprep.subr.bf16.mxu0 %v1182
    %1307 = vmatpush1.bf16.msra.mxu0 %v1181
    %1308 = vmatprep.subr.bf16.mxu0 %v1184
    %1309 = vmatpush1.bf16.msra.mxu0 %v1183
    %1310 = vmatprep.subr.bf16.mxu0 %v1186
    %1311 = vmatpush1.bf16.msra.mxu0 %v1185
    %1312 = vmatprep.subr.bf16.mxu0 0
    %1313 = vmatpush1.bf16.msra.mxu0 0
    %1314 = vmatprep.subr.bf16.mxu0 0
    %1315 = vmatpush1.bf16.msra.mxu0 0
    %1316 = vmatprep.subr.bf16.mxu0 0
    %1317 = vmatpush1.bf16.msra.mxu0 0
    %1318 = vmatprep.subr.bf16.mxu0 0
    %1319 = vmatpush1.bf16.msra.mxu0 0
    %1320 = vmatprep.subr.bf16.mxu0 0
    %1321 = vmatpush1.bf16.msra.mxu0 0
    %1322 = vmatprep.subr.bf16.mxu0 0
    %1323 = vmatpush1.bf16.msra.mxu0 0
    %1324 = vmatprep.subr.bf16.mxu0 0
    %1325 = vmatpush1.bf16.msra.mxu0 0
    %1326 = vmatprep.subr.bf16.mxu0 0
    %1327 = vmatpush1.bf16.msra.mxu0 0
    %1328 = vmatprep.mubr.bf16.mxu0 0
    %1329 = vmatmul.mubr.bf16.gmra.mrb[0].mxu0 %v928
    %v1330 = vpop.f32.mrb[0].mxu0
    %v1331 = vadd.f32 %v1270, %v1330
    %v1332 = vpop.f32.mrb[0].mxu0
    %v1333 = vadd.f32 %v1272, %v1332
    %v1334 = vpop.f32.mrb[0].mxu0
    %v1335 = vadd.f32 %v1274, %v1334
    %v1336 = vpop.f32.mrb[0].mxu0
    %v1337 = vadd.f32 %v1276, %v1336
    %1338 = vmatprep.mubr.bf16.mxu0 0
    %1339 = vmatmul.mubr.bf16.gmra.mrb[0].mxu0 %v931
    %v1340 = vpop.f32.mrb[0].mxu0
    %v1341 = vadd.f32 %v1280, %v1340
    %v1342 = vpop.f32.mrb[0].mxu0
    %v1343 = vadd.f32 %v1282, %v1342
    %v1344 = vpop.f32.mrb[0].mxu0
    %v1345 = vadd.f32 %v1284, %v1344
    %v1346 = vpop.f32.mrb[0].mxu0
    %v1347 = vadd.f32 %v1286, %v1346
    %1348 = vmatprep.mubr.bf16.mxu0 0
    %1349 = vmatmul.mubr.bf16.gmra.mrb[0].mxu0 %v934
    %v1350 = vpop.f32.mrb[0].mxu0
    %v1351 = vadd.f32 %v1290, %v1350
    %v1352 = vpop.f32.mrb[0].mxu0
    %v1353 = vadd.f32 %v1292, %v1352
    %v1354 = vpop.f32.mrb[0].mxu0
    %v1355 = vpop.f32.mrb[0].mxu0
    %1356 = vdwg.mxu0
    %v1357 = vxor.u32 %v1333, 2147483648
    %v1358 = vxor.u32 %v1337, 2147483648
    %v1359 = vxor.u32 %v1343, 2147483648
    %v1360 = vxor.u32 %v1347, 2147483648
    %v1361 = vxor.u32 %v1353, 2147483648
    %v1362 = vmul.f32 %v1357, 1.442695
    %v1363 = vpow.pop %v1362
    %v1364 = vmul.f32 %v1358, 1.442695
    %v1365 = vpow.pop %v1364
    %v1366 = vmul.f32 %v1359, 1.442695
    %v1367 = vpow.pop %v1366
    %v1368 = vmul.f32 %v1360, 1.442695
    %v1369 = vpow.pop %v1368
    %v1370 = vmul.f32 %v1361, 1.442695
    %v1371 = vpow.pop %v1370
    %v1372 = vadd.f32 %v1363, 1.0
    %v1373 = vadd.f32 %v1365, 1.0
    %v1374 = vadd.f32 %v1367, 1.0
    %v1375 = vadd.f32 %v1369, 1.0
    %v1376 = vadd.f32 %v1371, 1.0
    %v1377 = vrcp.pop %v1372
    %v1378 = vmul.f32 1.0, %v1377
    %v1379 = vrcp.pop %v1373
    %v1380 = vmul.f32 1.0, %v1379
    %v1381 = vrcp.pop %v1374
    %v1382 = vmul.f32 1.0, %v1381
    %v1383 = vrcp.pop %v1375
    %v1384 = vmul.f32 1.0, %v1383
    %v1385 = vrcp.pop %v1376
    %v1386 = vmul.f32 1.0, %v1385
    %v1387 = vsub.f32 %v1331, %v817
    %v1388 = vsub.f32 %v1335, %v824
    %v1389 = vsub.f32 %v1341, %v831
    %v1390 = vsub.f32 %v1345, %v838
    %v1391 = vsub.f32 %v1351, %v839
    %v1392 = vmul.f32 %v1378, %v1387
    %v1393 = vmul.f32 %v1380, %v1388
    %v1394 = vmul.f32 %v1382, %v1389
    %v1395 = vmul.f32 %v1384, %v1390
    %v1396 = vmul.f32 %v1386, %v1391
    %v1397 = vadd.f32 %v817, %v1392
    %v1398 = vadd.f32 %v824, %v1393
    %v1399 = vadd.f32 %v831, %v1394
    %v1400 = vadd.f32 %v838, %v1395
    %v1401 = vadd.f32 %v839, %v1396
    %1403 = vset.pattern.permute.xlu0 0
    %1404 = vperm.xlu0 %1403, %v840
    %v1405 = vpop.permute.xlu0 %1404
    %1408 = vset.pattern.permute.xlu0 0
    %1409 = vperm.xlu0 %1408, %v841
    %v1410 = vpop.permute.xlu0 %1409
    %1413 = vset.pattern.permute.xlu0 0
    %1414 = vperm.xlu0 %1413, %v842
    %v1415 = vpop.permute.xlu0 %1414
    %1418 = vset.pattern.permute.xlu0 0
    %1419 = vperm.xlu0 %1418, %v843
    %v1420 = vpop.permute.xlu0 %1419
    %1423 = vset.pattern.permute.xlu0 0
    %1424 = vperm.xlu0 %1423, %v844
    %v1425 = vpop.permute.xlu0 %1424
    %v1427 = vmul.f32 %v1397, %v1405
    %v1428 = vmul.f32 %v1398, %v1410
    %v1429 = vmul.f32 %v1399, %v1415
    %v1430 = vmul.f32 %v1400, %v1420
    %v1431 = vmul.f32 %v1401, %v1425
    %v1437 = vrot.slane %v1427, 7
    %v1438 = vrot.slane %v1428, 7
    %v1439 = vsel %vm804, %v1437, %v1438
    %v1440 = vrot.slane %v1429, 7
    %v1441 = vsel %vm804, %v1438, %v1440
    %v1442 = vrot.slane %v1430, 7
    %v1443 = vsel %vm804, %v1440, %v1442
    %v1444 = vrot.slane %v1431, 7
    %v1445 = vsel %vm804, %v1442, %v1444
    %v1451 = vsel %vm804, 0.0, %v1437
    %v1452 = vsel %vm866, 0.0, %v1451
    %v1453 = vsel %vm867, 0.0, %v1439
    %v1454 = vsel %vm868, 0.0, %v1441
    %v1455 = vsel %vm869, 0.0, %v1443
    %v1456 = vsel %vm870, 0.0, %v1445
    %v1457 = vrot.slane %v1427, 1
    %v1458 = vrot.slane %v1428, 1
    %v1459 = vsel %vm816, %v1457, %v1458
    %v1460 = vrot.slane %v1429, 1
    %v1461 = vsel %vm816, %v1458, %v1460
    %v1462 = vrot.slane %v1430, 1
    %v1463 = vsel %vm816, %v1460, %v1462
    %v1464 = vrot.slane %v1431, 1
    %v1465 = vsel %vm816, %v1462, %v1464
    %v1471 = vsel %vm804, %v1464, 0.0
    %v1472 = vsel %vm876, 0.0, %v1459
    %v1473 = vsel %vm877, 0.0, %v1461
    %v1474 = vsel %vm878, 0.0, %v1463
    %v1475 = vsel %vm879, 0.0, %v1465
    %v1476 = vsel %vm880, 0.0, %v1471
    %v1477 = vpack.c.bf16 %v1453, %v1452
    %v1478 = vpack.c.bf16 %v1428, %v1427
    %v1479 = vpack.c.bf16 %v1473, %v1472
    %v1480 = vpack.c.bf16 %v1455, %v1454
    %v1481 = vpack.c.bf16 %v1430, %v1429
    %v1482 = vpack.c.bf16 %v1475, %v1474
    %v1483 = vpack.c.bf16 %v1456, %v1456
    %v1484 = vpack.c.bf16 %v1431, %v1431
    %v1485 = vpack.c.bf16 %v1476, %v1476
    %v1486 = vld [vmem:[#allocation7] sm:$0xff]
    %v1487 = vld [vmem:[#allocation7 + $0x8] sm:$0xff]
    %v1488 = vld [vmem:[#allocation7 + $0x10] sm:$0xff]
    %v1489 = vld [vmem:[#allocation7 + $0x18] sm:$0xff]
    %v1490 = vld [vmem:[#allocation7 + $0x20] sm:$0xff]
    %v1491 = vld [vmem:[#allocation7 + $0x28] sm:$0xff]
    %v1492 = vld [vmem:[#allocation7 + $0x30] sm:$0xff]
    %v1493 = vld [vmem:[#allocation7 + $0x38] sm:$0xff]
    %v1494 = vld [vmem:[#allocation7 + $0x40] sm:$0xff]
    %v1495 = vld [vmem:[#allocation7 + $0x48] sm:$0xff]
    %v1496 = vld [vmem:[#allocation7 + $0x50] sm:$0xff]
    %v1497 = vld [vmem:[#allocation7 + $0x58] sm:$0xff]
    %v1498 = vld [vmem:[#allocation7 + $0x60] sm:$0xff]
    %v1499 = vld [vmem:[#allocation7 + $0x68] sm:$0xff]
    %v1500 = vld [vmem:[#allocation7 + $0x70] sm:$0xff]
    %v1501 = vld [vmem:[#allocation7 + $0x78] sm:$0xff]
    %v1502 = vld [vmem:[#allocation7 + $0x80] sm:$0xff]
    %v1503 = vld [vmem:[#allocation7 + $0x88] sm:$0xff]
    %v1504 = vld [vmem:[#allocation7 + $0x90] sm:$0xff]
    %v1505 = vld [vmem:[#allocation7 + $0x98] sm:$0xff]
    %v1506 = vld [vmem:[#allocation7 + $0xa0] sm:$0xff]
    %v1507 = vld [vmem:[#allocation7 + $0xa8] sm:$0xff]
    %v1508 = vld [vmem:[#allocation7 + $0xb0] sm:$0xff]
    %v1509 = vld [vmem:[#allocation7 + $0xb8] sm:$0xff]
    %v1510 = vld [vmem:[#allocation7 + $0xc0] sm:$0xff]
    %v1511 = vld [vmem:[#allocation7 + $0xc8] sm:$0xff]
    %v1512 = vld [vmem:[#allocation7 + $0xd0] sm:$0xff]
    %v1513 = vld [vmem:[#allocation7 + $0xd8] sm:$0xff]
    %v1514 = vld [vmem:[#allocation7 + $0xe0] sm:$0xff]
    %v1515 = vld [vmem:[#allocation7 + $0xe8] sm:$0xff]
    %v1516 = vld [vmem:[#allocation7 + $0xf0] sm:$0xff]
    %v1517 = vld [vmem:[#allocation7 + $0xf8] sm:$0xff]
    %v1518 = vld [vmem:[#allocation7 + $0x100] sm:$0xff]
    %v1519 = vld [vmem:[#allocation7 + $0x108] sm:$0xff]
    %v1520 = vld [vmem:[#allocation7 + $0x110] sm:$0xff]
    %v1521 = vld [vmem:[#allocation7 + $0x118] sm:$0xff]
    %v1522 = vld [vmem:[#allocation7 + $0x120] sm:$0xff]
    %v1523 = vld [vmem:[#allocation7 + $0x128] sm:$0xff]
    %v1524 = vld [vmem:[#allocation7 + $0x130] sm:$0xff]
    %v1525 = vld [vmem:[#allocation7 + $0x138] sm:$0xff]
    %v1526 = vld [vmem:[#allocation7 + $0x140] sm:$0xff]
    %v1527 = vld [vmem:[#allocation7 + $0x148] sm:$0xff]
    %v1528 = vld [vmem:[#allocation7 + $0x150] sm:$0xff]
    %v1529 = vld [vmem:[#allocation7 + $0x158] sm:$0xff]
    %v1530 = vld [vmem:[#allocation7 + $0x160] sm:$0xff]
    %v1531 = vld [vmem:[#allocation7 + $0x168] sm:$0xff]
    %v1532 = vld [vmem:[#allocation7 + $0x170] sm:$0xff]
    %v1533 = vld [vmem:[#allocation7 + $0x178] sm:$0xff]
    %v1534 = vld [vmem:[%s7] sm:$0x3]
    %v1536 = vlaneseq
    %v1537 = vshrl.u32 %v1536, 7
    %v1538 = vsub.s32 0, %v1537
    %v1539 = vrot.slane %v1534, %v1538
    %v1540 = vlaneseq
    %v1541 = vshrl.u32 %v1540, 7
    %v1542 = vsub.s32 1, %v1541
    %v1543 = vrot.slane %v1534, %v1542
    %v1594 = vunpack.c.l.b16 %v1486
    %v1595 = vunpack.c.h.b16 %v1486
    %v1596 = vunpack.c.l.b16 %v1487
    %v1597 = vunpack.c.h.b16 %v1487
    %v1598 = vunpack.c.l.b16 %v1488
    %v1599 = vunpack.c.h.b16 %v1488
    %v1600 = vunpack.c.l.b16 %v1489
    %v1601 = vunpack.c.h.b16 %v1489
    %v1602 = vunpack.c.l.b16 %v1490
    %v1603 = vunpack.c.h.b16 %v1490
    %v1604 = vunpack.c.l.b16 %v1491
    %v1605 = vunpack.c.h.b16 %v1491
    %v1606 = vunpack.c.l.b16 %v1492
    %v1607 = vunpack.c.h.b16 %v1492
    %v1608 = vunpack.c.l.b16 %v1493
    %v1609 = vunpack.c.h.b16 %v1493
    %v1610 = vunpack.c.l.b16 %v1494
    %v1611 = vunpack.c.h.b16 %v1494
    %v1612 = vunpack.c.l.b16 %v1495
    %v1613 = vunpack.c.h.b16 %v1495
    %v1614 = vunpack.c.l.b16 %v1496
    %v1615 = vunpack.c.h.b16 %v1496
    %v1616 = vunpack.c.l.b16 %v1497
    %v1617 = vunpack.c.h.b16 %v1497
    %v1618 = vunpack.c.l.b16 %v1498
    %v1619 = vunpack.c.h.b16 %v1498
    %v1620 = vunpack.c.l.b16 %v1499
    %v1621 = vunpack.c.h.b16 %v1499
    %v1622 = vunpack.c.l.b16 %v1500
    %v1623 = vunpack.c.h.b16 %v1500
    %v1624 = vunpack.c.l.b16 %v1501
    %v1625 = vunpack.c.h.b16 %v1501
    %v1626 = vunpack.c.l.b16 %v1502
    %v1627 = vunpack.c.h.b16 %v1502
    %v1628 = vunpack.c.l.b16 %v1503
    %v1629 = vunpack.c.h.b16 %v1503
    %v1630 = vunpack.c.l.b16 %v1504
    %v1631 = vunpack.c.h.b16 %v1504
    %v1632 = vunpack.c.l.b16 %v1505
    %v1633 = vunpack.c.h.b16 %v1505
    %v1634 = vunpack.c.l.b16 %v1506
    %v1635 = vunpack.c.h.b16 %v1506
    %v1636 = vunpack.c.l.b16 %v1507
    %v1637 = vunpack.c.h.b16 %v1507
    %v1638 = vunpack.c.l.b16 %v1508
    %v1639 = vunpack.c.h.b16 %v1508
    %v1640 = vunpack.c.l.b16 %v1509
    %v1641 = vunpack.c.h.b16 %v1509
    %v1642 = vunpack.c.l.b16 %v1510
    %v1643 = vunpack.c.h.b16 %v1510
    %v1644 = vunpack.c.l.b16 %v1511
    %v1645 = vunpack.c.h.b16 %v1511
    %v1646 = vunpack.c.l.b16 %v1512
    %v1647 = vunpack.c.h.b16 %v1512
    %v1648 = vunpack.c.l.b16 %v1513
    %v1649 = vunpack.c.h.b16 %v1513
    %v1650 = vunpack.c.l.b16 %v1514
    %v1651 = vunpack.c.h.b16 %v1514
    %v1652 = vunpack.c.l.b16 %v1515
    %v1653 = vunpack.c.h.b16 %v1515
    %v1654 = vunpack.c.l.b16 %v1516
    %v1655 = vunpack.c.h.b16 %v1516
    %v1656 = vunpack.c.l.b16 %v1517
    %v1657 = vunpack.c.h.b16 %v1517
    %v1658 = vunpack.c.l.b16 %v1518
    %v1659 = vunpack.c.h.b16 %v1518
    %v1660 = vunpack.c.l.b16 %v1519
    %v1661 = vunpack.c.h.b16 %v1519
    %v1662 = vunpack.c.l.b16 %v1520
    %v1663 = vunpack.c.h.b16 %v1520
    %v1664 = vunpack.c.l.b16 %v1521
    %v1665 = vunpack.c.h.b16 %v1521
    %v1666 = vunpack.c.l.b16 %v1522
    %v1667 = vunpack.c.h.b16 %v1522
    %v1668 = vunpack.c.l.b16 %v1523
    %v1669 = vunpack.c.h.b16 %v1523
    %v1670 = vunpack.c.l.b16 %v1524
    %v1671 = vunpack.c.h.b16 %v1524
    %v1672 = vunpack.c.l.b16 %v1525
    %v1673 = vunpack.c.h.b16 %v1525
    %v1674 = vunpack.c.l.b16 %v1526
    %v1675 = vunpack.c.h.b16 %v1526
    %v1676 = vunpack.c.l.b16 %v1527
    %v1677 = vunpack.c.h.b16 %v1527
    %v1678 = vunpack.c.l.b16 %v1528
    %v1679 = vunpack.c.h.b16 %v1528
    %v1680 = vunpack.c.l.b16 %v1529
    %v1681 = vunpack.c.h.b16 %v1529
    %v1682 = vunpack.c.l.b16 %v1530
    %v1683 = vunpack.c.h.b16 %v1530
    %v1684 = vunpack.c.l.b16 %v1531
    %v1685 = vunpack.c.h.b16 %v1531
    %v1686 = vunpack.c.l.b16 %v1532
    %v1687 = vunpack.c.h.b16 %v1532
    %v1688 = vunpack.c.l.b16 %v1533
    %v1689 = vunpack.c.h.b16 %v1533
    %v1690 = vpack.c.b16 %v1596, %v1594
    %v1691 = vpack.c.b16 %v1597, %v1595
    %v1692 = vpack.c.b16 %v1600, %v1598
    %v1693 = vpack.c.b16 %v1601, %v1599
    %v1694 = vpack.c.b16 %v1604, %v1602
    %v1695 = vpack.c.b16 %v1605, %v1603
    %v1696 = vpack.c.b16 %v1608, %v1606
    %v1697 = vpack.c.b16 %v1609, %v1607
    %v1698 = vpack.c.b16 %v1612, %v1610
    %v1699 = vpack.c.b16 %v1613, %v1611
    %v1700 = vpack.c.b16 %v1616, %v1614
    %v1701 = vpack.c.b16 %v1617, %v1615
    %v1702 = vpack.c.b16 %v1620, %v1618
    %v1703 = vpack.c.b16 %v1621, %v1619
    %v1704 = vpack.c.b16 %v1624, %v1622
    %v1705 = vpack.c.b16 %v1625, %v1623
    %v1706 = vpack.c.b16 %v1628, %v1626
    %v1707 = vpack.c.b16 %v1629, %v1627
    %v1708 = vpack.c.b16 %v1632, %v1630
    %v1709 = vpack.c.b16 %v1633, %v1631
    %v1710 = vpack.c.b16 %v1636, %v1634
    %v1711 = vpack.c.b16 %v1637, %v1635
    %v1712 = vpack.c.b16 %v1640, %v1638
    %v1713 = vpack.c.b16 %v1641, %v1639
    %v1714 = vpack.c.b16 %v1644, %v1642
    %v1715 = vpack.c.b16 %v1645, %v1643
    %v1716 = vpack.c.b16 %v1648, %v1646
    %v1717 = vpack.c.b16 %v1649, %v1647
    %v1718 = vpack.c.b16 %v1652, %v1650
    %v1719 = vpack.c.b16 %v1653, %v1651
    %v1720 = vpack.c.b16 %v1656, %v1654
    %v1721 = vpack.c.b16 %v1657, %v1655
    %v1722 = vpack.c.b16 %v1660, %v1658
    %v1723 = vpack.c.b16 %v1661, %v1659
    %v1724 = vpack.c.b16 %v1664, %v1662
    %v1725 = vpack.c.b16 %v1665, %v1663
    %v1726 = vpack.c.b16 %v1668, %v1666
    %v1727 = vpack.c.b16 %v1669, %v1667
    %v1728 = vpack.c.b16 %v1672, %v1670
    %v1729 = vpack.c.b16 %v1673, %v1671
    %v1730 = vpack.c.b16 %v1676, %v1674
    %v1731 = vpack.c.b16 %v1677, %v1675
    %v1732 = vpack.c.b16 %v1680, %v1678
    %v1733 = vpack.c.b16 %v1681, %v1679
    %v1734 = vpack.c.b16 %v1684, %v1682
    %v1735 = vpack.c.b16 %v1685, %v1683
    %v1736 = vpack.c.b16 %v1688, %v1686
    %v1737 = vpack.c.b16 %v1689, %v1687
    %1786 = vmatprep.subr.bf16.mxu0 %v1691
    %1787 = vmatpush1.bf16.msra.mxu0 %v1690
    %1788 = vmatprep.subr.bf16.mxu0 %v1693
    %1789 = vmatpush1.bf16.msra.mxu0 %v1692
    %1790 = vmatprep.subr.bf16.mxu0 %v1695
    %1791 = vmatpush1.bf16.msra.mxu0 %v1694
    %1792 = vmatprep.subr.bf16.mxu0 %v1697
    %1793 = vmatpush1.bf16.msra.mxu0 %v1696
    %1794 = vmatprep.subr.bf16.mxu0 %v1699
    %1795 = vmatpush1.bf16.msra.mxu0 %v1698
    %1796 = vmatprep.subr.bf16.mxu0 %v1701
    %1797 = vmatpush1.bf16.msra.mxu0 %v1700
    %1798 = vmatprep.subr.bf16.mxu0 %v1703
    %1799 = vmatpush1.bf16.msra.mxu0 %v1702
    %1800 = vmatprep.subr.bf16.mxu0 %v1705
    %1801 = vmatpush1.bf16.msra.mxu0 %v1704
    %1802 = vmatprep.subr.bf16.mxu0 %v1707
    %1803 = vmatpush1.bf16.msra.mxu0 %v1706
    %1804 = vmatprep.subr.bf16.mxu0 %v1709
    %1805 = vmatpush1.bf16.msra.mxu0 %v1708
    %1806 = vmatprep.subr.bf16.mxu0 %v1711
    %1807 = vmatpush1.bf16.msra.mxu0 %v1710
    %1808 = vmatprep.subr.bf16.mxu0 %v1713
    %1809 = vmatpush1.bf16.msra.mxu0 %v1712
    %1810 = vmatprep.subr.bf16.mxu0 %v1715
    %1811 = vmatpush1.bf16.msra.mxu0 %v1714
    %1812 = vmatprep.subr.bf16.mxu0 %v1717
    %1813 = vmatpush1.bf16.msra.mxu0 %v1716
    %1814 = vmatprep.subr.bf16.mxu0 %v1719
    %1815 = vmatpush1.bf16.msra.mxu0 %v1718
    %1816 = vmatprep.subr.bf16.mxu0 %v1721
    %1817 = vmatpush1.bf16.msra.mxu0 %v1720
    %1818 = vmatprep.mubr.bf16.mxu0 %v1478
    %1819 = vmatmul.mubr.bf16.gmra.mrb[0].mxu0 %v1477
    %v1820 = vpop.f32.mrb[0].mxu0
    %v1821 = vadd.f32 %v1539, %v1820
    %v1822 = vpop.f32.mrb[0].mxu0
    %v1823 = vadd.f32 %v1543, %v1822
    %v1824 = vpop.f32.mrb[0].mxu0
    %v1825 = vadd.f32 %v1539, %v1824
    %v1826 = vpop.f32.mrb[0].mxu0
    %v1827 = vadd.f32 %v1543, %v1826
    %1828 = vmatprep.mubr.bf16.mxu0 %v1481
    %1829 = vmatmul.mubr.bf16.gmra.mrb[0].mxu0 %v1480
    %v1830 = vpop.f32.mrb[0].mxu0
    %v1831 = vadd.f32 %v1539, %v1830
    %v1832 = vpop.f32.mrb[0].mxu0
    %v1833 = vadd.f32 %v1543, %v1832
    %v1834 = vpop.f32.mrb[0].mxu0
    %v1835 = vadd.f32 %v1539, %v1834
    %v1836 = vpop.f32.mrb[0].mxu0
    %v1837 = vadd.f32 %v1543, %v1836
    %1838 = vmatprep.mubr.bf16.mxu0 %v1484
    %1839 = vmatmul.mubr.bf16.gmra.mrb[0].mxu0 %v1483
    %v1840 = vpop.f32.mrb[0].mxu0
    %v1841 = vadd.f32 %v1539, %v1840
    %v1842 = vpop.f32.mrb[0].mxu0
    %v1843 = vadd.f32 %v1543, %v1842
    %v1844 = vpop.f32.mrb[0].mxu0
    %v1845 = vpop.f32.mrb[0].mxu0
    %1846 = vdwg.mxu0
    %1847 = vmatprep.subr.bf16.mxu0 %v1723
    %1848 = vmatpush1.bf16.msra.mxu0 %v1722
    %1849 = vmatprep.subr.bf16.mxu0 %v1725
    %1850 = vmatpush1.bf16.msra.mxu0 %v1724
    %1851 = vmatprep.subr.bf16.mxu0 %v1727
    %1852 = vmatpush1.bf16.msra.mxu0 %v1726
    %1853 = vmatprep.subr.bf16.mxu0 %v1729
    %1854 = vmatpush1.bf16.msra.mxu0 %v1728
    %1855 = vmatprep.subr.bf16.mxu0 %v1731
    %1856 = vmatpush1.bf16.msra.mxu0 %v1730
    %1857 = vmatprep.subr.bf16.mxu0 %v1733
    %1858 = vmatpush1.bf16.msra.mxu0 %v1732
    %1859 = vmatprep.subr.bf16.mxu0 %v1735
    %1860 = vmatpush1.bf16.msra.mxu0 %v1734
    %1861 = vmatprep.subr.bf16.mxu0 %v1737
    %1862 = vmatpush1.bf16.msra.mxu0 %v1736
    %1863 = vmatprep.subr.bf16.mxu0 0
    %1864 = vmatpush1.bf16.msra.mxu0 0
    %1865 = vmatprep.subr.bf16.mxu0 0
    %1866 = vmatpush1.bf16.msra.mxu0 0
    %1867 = vmatprep.subr.bf16.mxu0 0
    %1868 = vmatpush1.bf16.msra.mxu0 0
    %1869 = vmatprep.subr.bf16.mxu0 0
    %1870 = vmatpush1.bf16.msra.mxu0 0
    %1871 = vmatprep.subr.bf16.mxu0 0
    %1872 = vmatpush1.bf16.msra.mxu0 0
    %1873 = vmatprep.subr.bf16.mxu0 0
    %1874 = vmatpush1.bf16.msra.mxu0 0
    %1875 = vmatprep.subr.bf16.mxu0 0
    %1876 = vmatpush1.bf16.msra.mxu0 0
    %1877 = vmatprep.subr.bf16.mxu0 0
    %1878 = vmatpush1.bf16.msra.mxu0 0
    %1879 = vmatprep.mubr.bf16.mxu0 0
    %1880 = vmatmul.mubr.bf16.gmra.mrb[0].mxu0 %v1479
    %v1881 = vpop.f32.mrb[0].mxu0
    %v1882 = vadd.f32 %v1821, %v1881
    %v1883 = vpop.f32.mrb[0].mxu0
    %v1884 = vadd.f32 %v1823, %v1883
    %v1885 = vpop.f32.mrb[0].mxu0
    %v1886 = vadd.f32 %v1825, %v1885
    %v1887 = vpop.f32.mrb[0].mxu0
    %v1888 = vadd.f32 %v1827, %v1887
    %1889 = vmatprep.mubr.bf16.mxu0 0
    %1890 = vmatmul.mubr.bf16.gmra.mrb[0].mxu0 %v1482
    %v1891 = vpop.f32.mrb[0].mxu0
    %v1892 = vadd.f32 %v1831, %v1891
    %v1893 = vpop.f32.mrb[0].mxu0
    %v1894 = vadd.f32 %v1833, %v1893
    %v1895 = vpop.f32.mrb[0].mxu0
    %v1896 = vadd.f32 %v1835, %v1895
    %v1897 = vpop.f32.mrb[0].mxu0
    %v1898 = vadd.f32 %v1837, %v1897
    %1899 = vmatprep.mubr.bf16.mxu0 0
    %1900 = vmatmul.mubr.bf16.gmra.mrb[0].mxu0 %v1485
    %v1901 = vpop.f32.mrb[0].mxu0
    %v1902 = vadd.f32 %v1841, %v1901
    %v1903 = vpop.f32.mrb[0].mxu0
    %v1904 = vadd.f32 %v1843, %v1903
    %v1905 = vpop.f32.mrb[0].mxu0
    %v1906 = vpop.f32.mrb[0].mxu0
    %1907 = vdwg.mxu0
    %v1908 = vxor.u32 %v1884, 2147483648
    %v1909 = vxor.u32 %v1888, 2147483648
    %v1910 = vxor.u32 %v1894, 2147483648
    %v1911 = vxor.u32 %v1898, 2147483648
    %v1912 = vxor.u32 %v1904, 2147483648
    %v1913 = vmul.f32 %v1908, 1.442695
    %v1914 = vpow.pop %v1913
    %v1915 = vmul.f32 %v1909, 1.442695
    %v1916 = vpow.pop %v1915
    %v1917 = vmul.f32 %v1910, 1.442695
    %v1918 = vpow.pop %v1917
    %v1919 = vmul.f32 %v1911, 1.442695
    %v1920 = vpow.pop %v1919
    %v1921 = vmul.f32 %v1912, 1.442695
    %v1922 = vpow.pop %v1921
    %v1923 = vadd.f32 %v1914, 1.0
    %v1924 = vadd.f32 %v1916, 1.0
    %v1925 = vadd.f32 %v1918, 1.0
    %v1926 = vadd.f32 %v1920, 1.0
    %v1927 = vadd.f32 %v1922, 1.0
    %v1928 = vrcp.pop %v1923
    %v1929 = vmul.f32 1.0, %v1928
    %v1930 = vrcp.pop %v1924
    %v1931 = vmul.f32 1.0, %v1930
    %v1932 = vrcp.pop %v1925
    %v1933 = vmul.f32 1.0, %v1932
    %v1934 = vrcp.pop %v1926
    %v1935 = vmul.f32 1.0, %v1934
    %v1936 = vrcp.pop %v1927
    %v1937 = vmul.f32 1.0, %v1936
    %v1938 = vsub.f32 %v1882, %v1427
    %v1939 = vsub.f32 %v1886, %v1428
    %v1940 = vsub.f32 %v1892, %v1429
    %v1941 = vsub.f32 %v1896, %v1430
    %v1942 = vsub.f32 %v1902, %v1431
    %v1943 = vmul.f32 %v1929, %v1938
    %v1944 = vmul.f32 %v1931, %v1939
    %v1945 = vmul.f32 %v1933, %v1940
    %v1946 = vmul.f32 %v1935, %v1941
    %v1947 = vmul.f32 %v1937, %v1942
    %v1948 = vadd.f32 %v1427, %v1943
    %v1949 = vadd.f32 %v1428, %v1944
    %v1950 = vadd.f32 %v1429, %v1945
    %v1951 = vadd.f32 %v1430, %v1946
    %v1952 = vadd.f32 %v1431, %v1947
    %v1953 = vmul.f32 %v1948, %v1405
    %v1954 = vmul.f32 %v1949, %v1410
    %v1955 = vmul.f32 %v1950, %v1415
    %v1956 = vmul.f32 %v1951, %v1420
    %v1957 = vmul.f32 %v1952, %v1425
    %v1958 = vpack.c.bf16 %v1954, %v1953
    %v1959 = vpack.c.bf16 %v1956, %v1955
    %v1960 = vpack.c.bf16 %v1957, %v1957
    %v1961 = vld [vmem:[%s8] sm:$0xf]
    %v1962 = vld [vmem:[%s8 + $0x4] sm:$0xf]
    %v1963 = vld [vmem:[%s8 + $0x8] sm:$0xf]
    %v1964 = vld [vmem:[%s8 + $0xc] sm:$0xf]
    %v1965 = vld [vmem:[%s8 + $0x10] sm:$0xf]
    %v1966 = vld [vmem:[%s8 + $0x14] sm:$0xf]
    %v1967 = vld [vmem:[%s8 + $0x18] sm:$0xf]
    %v1968 = vld [vmem:[%s8 + $0x1c] sm:$0xf]
    %v1969 = vld [vmem:[%s8 + $0x20] sm:$0xf]
    %v1970 = vld [vmem:[%s8 + $0x24] sm:$0xf]
    %v1971 = vld [vmem:[%s8 + $0x28] sm:$0xf]
    %v1972 = vld [vmem:[%s8 + $0x2c] sm:$0xf]
    %v1973 = vld [vmem:[%s8 + $0x30] sm:$0xf]
    %v1974 = vld [vmem:[%s8 + $0x34] sm:$0xf]
    %v1975 = vld [vmem:[%s8 + $0x38] sm:$0xf]
    %v1976 = vld [vmem:[%s8 + $0x3c] sm:$0xf]
    %v1977 = vld [vmem:[%s9] sm:$0x1]
    %v1979 = vlaneseq
    %v1980 = vshrl.u32 %v1979, 7
    %v1981 = vsub.s32 0, %v1980
    %v1982 = vrot.slane %v1977, %v1981
    %v2000 = vunpack.c.l.b16 %v1961
    %v2001 = vunpack.c.l.b16 %v1962
    %v2002 = vunpack.c.l.b16 %v1963
    %v2003 = vunpack.c.l.b16 %v1964
    %v2004 = vunpack.c.l.b16 %v1965
    %v2005 = vunpack.c.l.b16 %v1966
    %v2006 = vunpack.c.l.b16 %v1967
    %v2007 = vunpack.c.l.b16 %v1968
    %v2008 = vunpack.c.l.b16 %v1969
    %v2009 = vunpack.c.l.b16 %v1970
    %v2010 = vunpack.c.l.b16 %v1971
    %v2011 = vunpack.c.l.b16 %v1972
    %v2012 = vunpack.c.l.b16 %v1973
    %v2013 = vunpack.c.l.b16 %v1974
    %v2014 = vunpack.c.l.b16 %v1975
    %v2015 = vunpack.c.l.b16 %v1976
    %v2016 = vpack.c.b16 %v2001, %v2000
    %v2017 = vpack.c.b16 %v2003, %v2002
    %v2018 = vpack.c.b16 %v2005, %v2004
    %v2019 = vpack.c.b16 %v2007, %v2006
    %v2020 = vpack.c.b16 %v2009, %v2008
    %v2021 = vpack.c.b16 %v2011, %v2010
    %v2022 = vpack.c.b16 %v2013, %v2012
    %v2023 = vpack.c.b16 %v2015, %v2014
    %2032 = vmatprep.subr.bf16.mxu0 0
    %2033 = vmatpush1.bf16.msra.mxu0 %v2016
    %2034 = vmatprep.subr.bf16.mxu0 0
    %2035 = vmatpush1.bf16.msra.mxu0 %v2017
    %2036 = vmatprep.subr.bf16.mxu0 0
    %2037 = vmatpush1.bf16.msra.mxu0 %v2018
    %2038 = vmatprep.subr.bf16.mxu0 0
    %2039 = vmatpush1.bf16.msra.mxu0 %v2019
    %2040 = vmatprep.subr.bf16.mxu0 0
    %2041 = vmatpush1.bf16.msra.mxu0 %v2020
    %2042 = vmatprep.subr.bf16.mxu0 0
    %2043 = vmatpush1.bf16.msra.mxu0 %v2021
    %2044 = vmatprep.subr.bf16.mxu0 0
    %2045 = vmatpush1.bf16.msra.mxu0 %v2022
    %2046 = vmatprep.subr.bf16.mxu0 0
    %2047 = vmatpush1.bf16.msra.mxu0 %v2023
    %2048 = vmatprep.subr.bf16.mxu0 0
    %2049 = vmatpush1.bf16.msra.mxu0 0
    %2050 = vmatprep.subr.bf16.mxu0 0
    %2051 = vmatpush1.bf16.msra.mxu0 0
    %2052 = vmatprep.subr.bf16.mxu0 0
    %2053 = vmatpush1.bf16.msra.mxu0 0
    %2054 = vmatprep.subr.bf16.mxu0 0
    %2055 = vmatpush1.bf16.msra.mxu0 0
    %2056 = vmatprep.subr.bf16.mxu0 0
    %2057 = vmatpush1.bf16.msra.mxu0 0
    %2058 = vmatprep.subr.bf16.mxu0 0
    %2059 = vmatpush1.bf16.msra.mxu0 0
    %2060 = vmatprep.subr.bf16.mxu0 0
    %2061 = vmatpush1.bf16.msra.mxu0 0
    %2062 = vmatprep.subr.bf16.mxu0 0
    %2063 = vmatpush1.bf16.msra.mxu0 0
    %2064 = vmatprep.mubr.bf16.mxu0 0
    %2065 = vmatmul.mubr.bf16.gmra.mrb[0].mxu0 %v1958
    %v2066 = vpop.f32.mrb[0].mxu0
    %v2067 = vadd.f32 %v1982, %v2066
    %v2068 = vpop.f32.mrb[0].mxu0
    %v2069 = vpop.f32.mrb[0].mxu0
    %v2070 = vadd.f32 %v1982, %v2069
    %v2071 = vpop.f32.mrb[0].mxu0
    %2072 = vmatprep.mubr.bf16.mxu0 0
    %2073 = vmatmul.mubr.bf16.gmra.mrb[0].mxu0 %v1959
    %v2074 = vpop.f32.mrb[0].mxu0
    %v2075 = vadd.f32 %v1982, %v2074
    %v2076 = vpop.f32.mrb[0].mxu0
    %v2077 = vpop.f32.mrb[0].mxu0
    %v2078 = vadd.f32 %v1982, %v2077
    %v2079 = vpop.f32.mrb[0].mxu0
    %2080 = vmatprep.mubr.bf16.mxu0 0
    %2081 = vmatmul.mubr.bf16.gmra.mrb[0].mxu0 %v1960
    %v2082 = vpop.f32.mrb[0].mxu0
    %v2083 = vadd.f32 %v1982, %v2082
    %v2084 = vpop.f32.mrb[0].mxu0
    %v2085 = vpop.f32.mrb[0].mxu0
    %v2086 = vpop.f32.mrb[0].mxu0
    %2087 = vdwg.mxu0
    %2088 = vst [vmem:[%s10] sm:$0xff] %v2067
    %2089 = vst [vmem:[%s10 + $0x8] sm:$0xff] %v2070
    %2090 = vst [vmem:[%s10 + $0x10] sm:$0xff] %v2075
    %2091 = vst [vmem:[%s10 + $0x18] sm:$0xff] %v2078
    %2092 = vst [vmem:[%s10 + $0x20] sm:$0x3] %v2083
    // Predicated region
    $region58: #{vae_decoder_forward.1} parent=1 // pred_check
      _
    $region59: #{vae_decoder_forward.1} parent=1 // pred_check_branch
      %2094 = sbr.rel (0) target = $region61
    $region60: #{vae_decoder_forward.1} parent=1 // pred_region
      _
    $region61: #{vae_decoder_forward.1} parent=1 // pred_fallthru
      _
    // Predicated region
    $region62: #{vae_decoder_forward.1} parent=1 // pred_check
      _
    $region63: #{vae_decoder_forward.1} parent=1 // pred_check_branch
      %2096 = sbr.rel (0) target = $region65
    $region64: #{vae_decoder_forward.1} parent=1 // pred_region
      _
    $region65: #{vae_decoder_forward.1} parent=1 // pred_fallthru
      _
    %2097 = vsyncpa [#allocation3], 1
    %2098 = vsyncpa [#allocation5], 1
    %2099 = vsyncpa [#allocation8], 1

</llo_original>
